<compile_context>
chip_gen: v6e
topology: v6e:2x2x1
jax: 0.10.0
libtpu: 0.0.40
codegen_flags: <defaults>
</compile_context>

<pallas_src>
import functools

import jax
import jax.numpy as jnp
from jax.experimental import pallas as pl
from jax.experimental.pallas import tpu as pltpu


# ----------------------------------------------------------------------------
# Model dimensions (from GINConvNet.__init__)
# ----------------------------------------------------------------------------
DIM = 32
NUM_FEATURES_XD = 78
XD_PAD = 128                              # padded node-feature width (lane tile)
NUM_FEATURES_XT = 25
VOCAB_PAD = 32                            # 26 -> 32 padded vocab (zero cols unused)
EMBED_DIM = 128
N_FILTERS = 32
OUTPUT_DIM = 128
LM_DIM = 1024
SEQ_LEN = 1000
KSIZE = 8
CONV_LOUT = SEQ_LEN - KSIZE + 1           # 993
CONV_LPAD = 1024                          # lane-dense padded conv length
CONV_LIN_PAD = 1152                       # padded id length (>= CONV_LPAD + KSIZE - 1)


def _cparams(*sem):
    return pltpu.CompilerParams(
        dimension_semantics=sem,
        vmem_limit_bytes=32 * 1024 * 1024,    # safe on v7x's 64 MiB physical VMEM
    )


# ----------------------------------------------------------------------------
# Pallas kernels
# ----------------------------------------------------------------------------
def gin_branch_kernel(adj_ref, x_ref, w10_ref, w1r_ref, w2_ref, vec_ref,
                      pool_ref, fcw_ref, fcb_ref, o_ref):
    """Fused graph branch.

    5x (GINConv(eps=0) -> ReLU -> BatchNorm1d(eval, folded)) then
    global_add_pool -> fc1_xd -> ReLU.   Everything stays in VMEM.

    adj_ref  : [N, N]      (A + I) dense aggregation operator
    x_ref    : [N, 128]    node features, zero-padded from 78 -> 128
    w10_ref  : [128, 32]   layer-0 first Linear (rows 78..127 are zero)
    w1r_ref  : [4*32, 32]  layers 1..4 first Linear (row-stacked)
    w2_ref   : [5*32, 32]  layers 0..4 second Linear (row-stacked)
    vec_ref  : [5*4, 32]   per layer rows: b1, b2, bn_scale, bn_shift
    pool_ref : [B, N]      one-hot global_add_pool matrix
    fcw_ref  : [32, 128]   fc1_xd
    fcb_ref  : [1, 128]
    o_ref    : [B, 128]
    """
    adj = adj_ref[...]
    vecs = vec_ref[...]
    w1r = w1r_ref[...]
    w2a = w2_ref[...]

    def vrow(layer, which):                       # -> (1, 32)
        r = layer * 4 + which
        return vecs[r:r + 1, :]

    def mlp_bn(pre, layer):
        # pre = ((A+I)@h) @ W1   (bias not yet added)
        t = jnp.maximum(pre + vrow(layer, 0), 0.0)
        t = jnp.dot(t, w2a[layer * DIM:(layer + 1) * DIM, :],
                    preferred_element_type=jnp.float32) + vrow(layer, 1)
        t = jnp.maximum(t, 0.0)                               # F.relu(conv(x))
        return t * vrow(layer, 2) + vrow(layer, 3)            # BN eval (folded)

    # layer 0, reassociated: (A+I) @ (x @ W1)  -> NxN contraction is 32 wide
    xw = jnp.dot(x_ref[...], w10_ref[...], preferred_element_type=jnp.float32)
    h = mlp_bn(jnp.dot(adj, xw, preferred_element_type=jnp.float32), 0)

    for i in range(4):                            # layers 1..4 (static unroll)
        agg = jnp.dot(adj, h, preferred_element_type=jnp.float32)
        pre = jnp.dot(agg, w1r[i * DIM:(i + 1) * DIM, :],
                      preferred_element_type=jnp.float32)
        h = mlp_bn(pre, i + 1)

    # global_add_pool + fc1_xd + ReLU   (dropout = identity in eval mode)
    pooled = jnp.dot(pool_ref[...], h, preferred_element_type=jnp.float32)
    xg = jnp.dot(pooled, fcw_ref[...], preferred_element_type=jnp.float32) + fcb_ref[...]
    o_ref[...] = jnp.maximum(xg, 0.0).astype(o_ref.dtype)


def protein_branch_kernel(tgt_ref, embt_ref, cw_ref, cb_ref, wxt_ref, bxt_ref, o_ref):
    """Fully fused protein branch for one sample (grid over B).

    embedding gather (one-hot matmul) -> Conv1d(128->32, k=8) -> ReLU
    -> channel-major flatten -> fc1_xt -> ReLU.

    tgt_ref  : [1, 1, 1152] int32   token ids, zero-padded past L=1000
    embt_ref : [128, 32]    bf16    transposed embedding table (cols >= 26 zero)
    cw_ref   : [256, 128]   bf16    row k*32+c holds conv weight W[c, :, k]
    cb_ref   : [32, 1]      f32     conv bias
    wxt_ref  : [32, 1024, 128] bf16 fc1_xt weight, [c, l, :] = W[c*993+l, :];
                                    rows with l >= 993 are ZERO (tail invariant)
    bxt_ref  : [1, 128]     f32
    o_ref    : [1, 1, 128]  f32
    """
    ids = tgt_ref[0]                                            # [1, 1152] int32
    vocab = jax.lax.broadcasted_iota(jnp.int32, (VOCAB_PAD, CONV_LIN_PAD), 0)
    one = jnp.ones((), jnp.bfloat16)
    zero = jnp.zeros((), jnp.bfloat16)
    onehot = jnp.where(vocab == ids, one, zero)                 # [32, 1152] bf16

    # embedding gather as an exact one-hot matmul: x_cm[i, p] = emb[ids[p], i]
    x_cm = jnp.dot(embt_ref[...], onehot,
                   preferred_element_type=jnp.float32).astype(jnp.bfloat16)  # [128,1152]

    # Conv1d as one full-M matmul (fills the 256-wide MXU) + 7 shifted adds.
    y = jnp.dot(cw_ref[...], x_cm, preferred_element_type=jnp.float32)       # [256,1152]
    acc = y[0:N_FILTERS, 0:CONV_LPAD]
    for k in range(1, KSIZE):
        acc = acc + y[k * N_FILTERS:(k + 1) * N_FILTERS, k:k + CONV_LPAD]
    act = jnp.maximum(acc + cb_ref[...], 0.0)                   # [32, 1024] f32

    # Fused fc1_xt: channel-major flatten matches torch's .view(B, -1); the conv
    # tail columns (l >= 993) are annihilated by the zero rows of wxt_ref, so no
    # masking is needed.  Dropout = identity (eval).
    xt = jnp.zeros((1, OUTPUT_DIM), jnp.float32)
    for c in range(N_FILTERS):
        xt = xt + jnp.dot(act[c:c + 1, :].astype(jnp.bfloat16), wxt_ref[c],
                          preferred_element_type=jnp.float32)
    xt = jnp.maximum(xt + bxt_ref[...], 0.0)
    o_ref[0] = xt.astype(o_ref.dtype)


def head_kernel(xg_ref, xt_ref, dlm_ref, plm_ref, w1a_ref, w1b_ref, w1c_ref,
                w1d_ref, b1_ref, w2_ref, b2_ref, w3_ref, b3_ref, o_ref):
    """Fused fc1 -> ReLU -> fc2 -> ReLU -> out (dropout = identity in eval).

    fc1 is row-split into the four concat segments, so no wrapper concatenate:
        h = xg @ W_a + xt @ W_b + drug_lm @ W_c + protein_lm @ W_d + b1
    """
    def mm(x, w_ref):
        w = w_ref[...]
        return jnp.dot(x.astype(w.dtype), w, preferred_element_type=jnp.float32)

    h = (mm(xg_ref[...], w1a_ref)
         + mm(xt_ref[...][:, 0, :], w1b_ref)
         + mm(dlm_ref[...], w1c_ref)
         + mm(plm_ref[...], w1d_ref)
         + b1_ref[...])
    h = jnp.maximum(h, 0.0)
    h = jnp.maximum(mm(h, w2_ref) + b2_ref[...], 0.0)
    # out layer: N=1, computed as a lane reduction instead of a 1-wide matmul
    o = jnp.sum(h * w3_ref[...], axis=-1, keepdims=True) + b3_ref[...]
    o_ref[...] = o.astype(o_ref.dtype)


# ----------------------------------------------------------------------------
# Wrappers around pallas_call
# ----------------------------------------------------------------------------
def _call_full(kernel, inputs, out_shape, out_dtype=jnp.float32):
    """Single-step grid, every operand materialized as one full VMEM block."""
    def zero_map(nd, *_):
        return (0,) * nd

    in_specs = [pl.BlockSpec(a.shape, functools.partial(zero_map, a.ndim)) for a in inputs]
    out_specs = pl.BlockSpec(out_shape, functools.partial(zero_map, len(out_shape)))
    return pl.pallas_call(
        kernel,
        out_shape=jax.ShapeDtypeStruct(out_shape, out_dtype),
        grid=(1,),
        in_specs=in_specs,
        out_specs=out_specs,
        compiler_params=_cparams("arbitrary"),
    )(*inputs)


def pallas_protein_branch(tgt_pad, params):
    """tgt_pad [B, 1, 1152] int32 -> xt [B, 1, 128] f32; grid over B (parallel).

    All weights use constant index_maps -> DMA'd once and VMEM-resident across B
    (fc1_xt_w 8 MiB bf16 is the big one; total VMEM well under the 32 MiB limit).
    """
    B = tgt_pad.shape[0]
    return pl.pallas_call(
        protein_branch_kernel,
        out_shape=jax.ShapeDtypeStruct((B, 1, OUTPUT_DIM), jnp.float32),
        grid=(B,),
        in_specs=[
            pl.BlockSpec((1, 1, CONV_LIN_PAD), lambda b: (b, 0, 0)),
            pl.BlockSpec((EMBED_DIM, VOCAB_PAD), lambda b: (0, 0)),
            pl.BlockSpec((KSIZE * N_FILTERS, EMBED_DIM), lambda b: (0, 0)),
            pl.BlockSpec((N_FILTERS, 1), lambda b: (0, 0)),
            pl.BlockSpec((N_FILTERS, CONV_LPAD, OUTPUT_DIM), lambda b: (0, 0, 0)),
            pl.BlockSpec((1, OUTPUT_DIM), lambda b: (0, 0)),
        ],
        out_specs=pl.BlockSpec((1, 1, OUTPUT_DIM), lambda b: (b, 0, 0)),
        compiler_params=_cparams("parallel"),
    )(tgt_pad, params["emb_t"], params["conv_w"], params["conv_b"],
      params["fc1_xt_w"], params["fc1_xt_b"])


# ----------------------------------------------------------------------------
# Parameters (deterministic synthetic init, shapes from GINConvNet.__init__)
# ----------------------------------------------------------------------------
def init_params(key):
    keys = iter(jax.random.split(key, 64))

    def dense(fan_in, fan_out):
        s = 1.0 / jnp.sqrt(float(fan_in))
        w = jax.random.uniform(next(keys), (fan_in, fan_out), jnp.float32, -s, s)
        b = jax.random.uniform(next(keys), (fan_out,), jnp.float32, -s, s)
        return w, b

    params = {}

    # ---- GIN layers: pack weights / biases / folded-BN into few dense operands ----
    w1_list, w2_list, vec_list = [], [], []
    fin = NUM_FEATURES_XD
    for _ in range(5):
        w1, b1 = dense(fin, DIM)
        w2, b2 = dense(DIM, DIM)
        # BatchNorm1d eval with default running stats (mean=0, var=1, gamma=1, beta=0).
        # NOTE: loading a real checkpoint requires recomputing scale/shift here.
        gamma = jnp.ones((DIM,), jnp.float32)
        beta = jnp.zeros((DIM,), jnp.float32)
        mean = jnp.zeros((DIM,), jnp.float32)
        var = jnp.ones((DIM,), jnp.float32)
        scale = gamma * jax.lax.rsqrt(var + 1e-5)
        shift = beta - mean * scale
        w1_list.append(w1)
        w2_list.append(w2)
        vec_list.append(jnp.stack([b1, b2, scale, shift], axis=0))   # [4, 32]
        fin = DIM
    # layer-0 W1 zero-padded 78 -> 128 rows (x is zero-padded to match)
    params["gin_w1_0"] = jnp.pad(w1_list[0],
                                 ((0, XD_PAD - NUM_FEATURES_XD), (0, 0)))  # [128, 32]
    params["gin_w1_rest"] = jnp.concatenate(w1_list[1:], axis=0)      # [128, 32]
    params["gin_w2"] = jnp.concatenate(w2_list, axis=0)               # [160, 32]
    params["gin_vecs"] = jnp.concatenate(vec_list, axis=0)            # [20, 32]

    params["fc1_xd_w"], fc1_xd_b = dense(DIM, OUTPUT_DIM)
    params["fc1_xd_b"] = fc1_xd_b.reshape(1, OUTPUT_DIM)

    # ---- protein branch ----
    emb = jax.random.normal(next(keys), (NUM_FEATURES_XT + 1, EMBED_DIM), jnp.float32)
    emb_t = jnp.zeros((EMBED_DIM, VOCAB_PAD), jnp.float32)
    emb_t = emb_t.at[:, :NUM_FEATURES_XT + 1].set(emb.T)
    params["emb_t"] = emb_t.astype(jnp.bfloat16)                      # [128, 32] bf16

    s = 1.0 / jnp.sqrt(float(EMBED_DIM * KSIZE))
    conv_w = jax.random.uniform(next(keys), (KSIZE, EMBED_DIM, N_FILTERS),
                                jnp.float32, -s, s)                   # W[k, i, c]
    # row k*C_out + c = W[k, :, c]  -> [K*C_out, C_in] for the single full-M matmul
    params["conv_w"] = jnp.transpose(conv_w, (0, 2, 1)).reshape(
        KSIZE * N_FILTERS, EMBED_DIM).astype(jnp.bfloat16)            # [256, 128] bf16
    conv_b = jax.random.uniform(next(keys), (N_FILTERS,), jnp.float32, -s, s)
    params["conv_b"] = conv_b.reshape(N_FILTERS, 1)

    # fc1_xt: reorder rows from (c*993 + l) to [c, l, :] with zero rows for l >= 993
    # (the zero rows are what makes the conv tail mask unnecessary), bf16, ONCE.
    fc1_xt_w, fc1_xt_b = dense(N_FILTERS * CONV_LOUT, OUTPUT_DIM)     # [31776, 128]
    w3 = fc1_xt_w.reshape(N_FILTERS, CONV_LOUT, OUTPUT_DIM)
    w3 = jnp.pad(w3, ((0, 0), (0, CONV_LPAD - CONV_LOUT), (0, 0)))
    params["fc1_xt_w"] = w3.astype(jnp.bfloat16)                      # [32, 1024, 128]
    params["fc1_xt_b"] = fc1_xt_b.reshape(1, OUTPUT_DIM)

    # ---- combined head: fc1 [2304, 1024] row-split by concat segment, bf16 ----
    fc1_w, fc1_b = dense(2 * OUTPUT_DIM + 2 * LM_DIM, 1024)           # [2304, 1024]
    params["fc1_w_xg"] = fc1_w[0:OUTPUT_DIM].astype(jnp.bfloat16)
    params["fc1_w_xt"] = fc1_w[OUTPUT_DIM:2 * OUTPUT_DIM].astype(jnp.bfloat16)
    params["fc1_w_dlm"] = fc1_w[2 * OUTPUT_DIM:2 * OUTPUT_DIM + LM_DIM].astype(jnp.bfloat16)
    params["fc1_w_plm"] = fc1_w[2 * OUTPUT_DIM + LM_DIM:].astype(jnp.bfloat16)
    params["fc1_b"] = fc1_b.reshape(1, 1024)
    fc2_w, fc2_b = dense(1024, 256)
    params["fc2_w"] = fc2_w.astype(jnp.bfloat16)                      # [1024, 256] bf16
    params["fc2_b"] = fc2_b.reshape(1, 256)
    out_w, out_b = dense(256, 1)
    params["out_w"] = out_w.T                                         # [1, 256] f32
    params["out_b"] = out_b.reshape(1, 1)
    return params


# ----------------------------------------------------------------------------
# Forward pass
# ----------------------------------------------------------------------------
def gin_convnet_forward(params, x, adj_plus_i, pool, target, drug_lm, protein_lm):
    batch_size = pool.shape[0]

    # ---- graph branch: one fused kernel (5x GIN+ReLU+BN, pool, fc1_xd, ReLU) ------
    x_pad = jnp.pad(x, ((0, 0), (0, XD_PAD - x.shape[1])))            # 78 -> 128, tiny
    xg = _call_full(
        gin_branch_kernel,
        [adj_plus_i, x_pad,
         params["gin_w1_0"], params["gin_w1_rest"], params["gin_w2"], params["gin_vecs"],
         pool, params["fc1_xd_w"], params["fc1_xd_b"]],
        (batch_size, OUTPUT_DIM))

    # ---- protein branch: one fused kernel (gather + conv1d + ReLU + fc1_xt + ReLU) -
    tgt = jnp.pad(target.astype(jnp.int32),
                  ((0, 0), (0, CONV_LIN_PAD - SEQ_LEN)))              # pad ids, ~5 KiB
    tgt = tgt[:, None, :]                                             # [B, 1, 1152]
    xt3 = pallas_protein_branch(tgt, params)                          # [B, 1, 128]

    # ---- fused MLP head (fc1 -> ReLU -> fc2 -> ReLU -> out), no concatenate --------
    out = _call_full(
        head_kernel,
        [xg, xt3,
         drug_lm.reshape(batch_size, LM_DIM), protein_lm.reshape(batch_size, LM_DIM),
         params["fc1_w_xg"], params["fc1_w_xt"], params["fc1_w_dlm"], params["fc1_w_plm"],
         params["fc1_b"], params["fc2_w"], params["fc2_b"],
         params["out_w"], params["out_b"]],
        (batch_size, 1))
    return out


# ----------------------------------------------------------------------------
# Example data + run
# ----------------------------------------------------------------------------
if __name__ == "__main__":
    key = jax.random.PRNGKey(0)
    k_param, k_x, k_tgt, k_dlm, k_plm = jax.random.split(key, 5)
    params = init_params(k_param)

    # small synthetic batch: 2 graphs, 8 nodes each
    B = 2
    nodes_per_graph = 8
    N = B * nodes_per_graph
    x = jax.random.normal(k_x, (N, NUM_FEATURES_XD), jnp.float32)

    # chain edges (both directions) inside each graph -> edge_index equivalent
    src, dst = [], []
    for g in range(B):
        base = g * nodes_per_graph
        for i in range(nodes_per_graph - 1):
            src += [base + i, base + i + 1]
            dst += [base + i + 1, base + i]
    src = jnp.array(src, jnp.int32)
    dst = jnp.array(dst, jnp.int32)
    # densified GIN aggregation operator: (A + I), A[t, s] += 1 per edge s->t
    adj_plus_i = (jnp.zeros((N, N), jnp.float32).at[dst, src].add(1.0)
                  + jnp.eye(N, dtype=jnp.float32))

    # batch assignment -> one-hot pooling matrix for global_add_pool
    batch_vec = jnp.repeat(jnp.arange(B, dtype=jnp.int32), nodes_per_graph)
    pool = (batch_vec[None, :] == jnp.arange(B, dtype=jnp.int32)[:, None]).astype(jnp.float32)

    target = jax.random.randint(k_tgt, (B, SEQ_LEN), 0, NUM_FEATURES_XT + 1, dtype=jnp.int32)
    drug_lm = jax.random.normal(k_dlm, (B, LM_DIM), jnp.float32)
    protein_lm = jax.random.normal(k_plm, (B, LM_DIM), jnp.float32)

    out = gin_convnet_forward(params, x, adj_plus_i, pool, target, drug_lm, protein_lm)
    out = jax.block_until_ready(out)
    assert out.shape == (B, 1) and out.dtype == jnp.float32
    print("KERNEL_OK")
</pallas_src>

<mosaic_0001>
module attributes {stable_mosaic.version = 11 : i64} {
  func.func @gin_branch_kernel(%arg0: i32, %arg1: memref<16x16xf32, #tpu.memory_space<vmem>>, %arg2: memref<16x128xf32, #tpu.memory_space<vmem>>, %arg3: memref<128x32xf32, #tpu.memory_space<vmem>>, %arg4: memref<128x32xf32, #tpu.memory_space<vmem>>, %arg5: memref<160x32xf32, #tpu.memory_space<vmem>>, %arg6: memref<20x32xf32, #tpu.memory_space<vmem>>, %arg7: memref<2x16xf32, #tpu.memory_space<vmem>>, %arg8: memref<32x128xf32, #tpu.memory_space<vmem>>, %arg9: memref<1x128xf32, #tpu.memory_space<vmem>>, %arg10: memref<2x128xf32, #tpu.memory_space<vmem>>) attributes {dimension_semantics = [#tpu.dimension_semantics<arbitrary>], iteration_bounds = array<i64: 1>, scalar_prefetch = 0 : i64, scratch_operands = 0 : i64, tpu.core_type = #tpu.core_type<tc>, window_params = [{pipeline_mode = #tpu.pipeline_mode<synchronous>, transform_indices = @transform_0, window_bounds = array<i64: 16, 16>}, {pipeline_mode = #tpu.pipeline_mode<synchronous>, transform_indices = @transform_1, window_bounds = array<i64: 16, 128>}, {pipeline_mode = #tpu.pipeline_mode<synchronous>, transform_indices = @transform_2, window_bounds = array<i64: 128, 32>}, {pipeline_mode = #tpu.pipeline_mode<synchronous>, transform_indices = @transform_3, window_bounds = array<i64: 128, 32>}, {pipeline_mode = #tpu.pipeline_mode<synchronous>, transform_indices = @transform_4, window_bounds = array<i64: 160, 32>}, {pipeline_mode = #tpu.pipeline_mode<synchronous>, transform_indices = @transform_5, window_bounds = array<i64: 20, 32>}, {pipeline_mode = #tpu.pipeline_mode<synchronous>, transform_indices = @transform_6, window_bounds = array<i64: 2, 16>}, {pipeline_mode = #tpu.pipeline_mode<synchronous>, transform_indices = @transform_7, window_bounds = array<i64: 32, 128>}, {pipeline_mode = #tpu.pipeline_mode<synchronous>, transform_indices = @transform_8, window_bounds = array<i64: 1, 128>}, {pipeline_mode = #tpu.pipeline_mode<synchronous>, transform_indices = @transform_9, window_bounds = array<i64: 2, 128>}]} {
    %c0 = arith.constant 0 : index
    %c0_0 = arith.constant 0 : index
    %0 = vector.load %arg1[%c0, %c0_0] : memref<16x16xf32, #tpu.memory_space<vmem>>, vector<16x16xf32>
    %c0_1 = arith.constant 0 : index
    %c0_2 = arith.constant 0 : index
    %1 = vector.load %arg6[%c0_1, %c0_2] : memref<20x32xf32, #tpu.memory_space<vmem>>, vector<20x32xf32>
    %c0_3 = arith.constant 0 : index
    %c0_4 = arith.constant 0 : index
    %2 = vector.load %arg4[%c0_3, %c0_4] : memref<128x32xf32, #tpu.memory_space<vmem>>, vector<128x32xf32>
    %c0_5 = arith.constant 0 : index
    %c0_6 = arith.constant 0 : index
    %3 = vector.load %arg5[%c0_5, %c0_6] : memref<160x32xf32, #tpu.memory_space<vmem>>, vector<160x32xf32>
    %c0_7 = arith.constant 0 : index
    %c0_8 = arith.constant 0 : index
    %4 = vector.load %arg2[%c0_7, %c0_8] : memref<16x128xf32, #tpu.memory_space<vmem>>, vector<16x128xf32>
    %c0_9 = arith.constant 0 : index
    %c0_10 = arith.constant 0 : index
    %5 = vector.load %arg3[%c0_9, %c0_10] : memref<128x32xf32, #tpu.memory_space<vmem>>, vector<128x32xf32>
    %cst = arith.constant dense<0.000000e+00> : vector<16x32xf32>
    %6 = tpu.matmul %4, %5, %cst {dimension_numbers = #tpu.dot_dimension_numbers<[1], [0], [0], [1], [0, 0, 1, 1], [], []>} : vector<16x128xf32>, vector<128x32xf32>, vector<16x32xf32> -> vector<16x32xf32>
    %cst_11 = arith.constant dense<0.000000e+00> : vector<16x32xf32>
    %7 = tpu.matmul %0, %6, %cst_11 {dimension_numbers = #tpu.dot_dimension_numbers<[1], [0], [0], [1], [0, 0, 1, 1], [], []>} : vector<16x16xf32>, vector<16x32xf32>, vector<16x32xf32> -> vector<16x32xf32>
    %8 = vector.extract_strided_slice %1 {offsets = [0, 0], sizes = [1, 32], strides = [1, 1]} : vector<20x32xf32> to vector<1x32xf32>
    %9 = vector.broadcast %8 : vector<1x32xf32> to vector<16x32xf32>
    %10 = arith.addf %7, %9 : vector<16x32xf32>
    %cst_12 = arith.constant 0.000000e+00 : f32
    %11 = vector.broadcast %cst_12 : f32 to vector<16x32xf32>
    %12 = arith.maximumf %10, %11 : vector<16x32xf32>
    %13 = vector.extract_strided_slice %3 {offsets = [0, 0], sizes = [32, 32], strides = [1, 1]} : vector<160x32xf32> to vector<32x32xf32>
    %cst_13 = arith.constant dense<0.000000e+00> : vector<16x32xf32>
    %14 = tpu.matmul %12, %13, %cst_13 {dimension_numbers = #tpu.dot_dimension_numbers<[1], [0], [0], [1], [0, 0, 1, 1], [], []>} : vector<16x32xf32>, vector<32x32xf32>, vector<16x32xf32> -> vector<16x32xf32>
    %15 = vector.extract_strided_slice %1 {offsets = [1, 0], sizes = [1, 32], strides = [1, 1]} : vector<20x32xf32> to vector<1x32xf32>
    %16 = vector.broadcast %15 : vector<1x32xf32> to vector<16x32xf32>
    %17 = arith.addf %14, %16 : vector<16x32xf32>
    %cst_14 = arith.constant 0.000000e+00 : f32
    %18 = vector.broadcast %cst_14 : f32 to vector<16x32xf32>
    %19 = arith.maximumf %17, %18 : vector<16x32xf32>
    %20 = vector.extract_strided_slice %1 {offsets = [2, 0], sizes = [1, 32], strides = [1, 1]} : vector<20x32xf32> to vector<1x32xf32>
    %21 = vector.broadcast %20 : vector<1x32xf32> to vector<16x32xf32>
    %22 = arith.mulf %19, %21 : vector<16x32xf32>
    %23 = vector.extract_strided_slice %1 {offsets = [3, 0], sizes = [1, 32], strides = [1, 1]} : vector<20x32xf32> to vector<1x32xf32>
    %24 = vector.broadcast %23 : vector<1x32xf32> to vector<16x32xf32>
    %25 = arith.addf %22, %24 : vector<16x32xf32>
    %cst_15 = arith.constant dense<0.000000e+00> : vector<16x32xf32>
    %26 = tpu.matmul %0, %25, %cst_15 {dimension_numbers = #tpu.dot_dimension_numbers<[1], [0], [0], [1], [0, 0, 1, 1], [], []>} : vector<16x16xf32>, vector<16x32xf32>, vector<16x32xf32> -> vector<16x32xf32>
    %27 = vector.extract_strided_slice %2 {offsets = [0, 0], sizes = [32, 32], strides = [1, 1]} : vector<128x32xf32> to vector<32x32xf32>
    %cst_16 = arith.constant dense<0.000000e+00> : vector<16x32xf32>
    %28 = tpu.matmul %26, %27, %cst_16 {dimension_numbers = #tpu.dot_dimension_numbers<[1], [0], [0], [1], [0, 0, 1, 1], [], []>} : vector<16x32xf32>, vector<32x32xf32>, vector<16x32xf32> -> vector<16x32xf32>
    %29 = vector.extract_strided_slice %1 {offsets = [4, 0], sizes = [1, 32], strides = [1, 1]} : vector<20x32xf32> to vector<1x32xf32>
    %30 = vector.broadcast %29 : vector<1x32xf32> to vector<16x32xf32>
    %31 = arith.addf %28, %30 : vector<16x32xf32>
    %cst_17 = arith.constant 0.000000e+00 : f32
    %32 = vector.broadcast %cst_17 : f32 to vector<16x32xf32>
    %33 = arith.maximumf %31, %32 : vector<16x32xf32>
    %34 = vector.extract_strided_slice %3 {offsets = [32, 0], sizes = [32, 32], strides = [1, 1]} : vector<160x32xf32> to vector<32x32xf32>
    %cst_18 = arith.constant dense<0.000000e+00> : vector<16x32xf32>
    %35 = tpu.matmul %33, %34, %cst_18 {dimension_numbers = #tpu.dot_dimension_numbers<[1], [0], [0], [1], [0, 0, 1, 1], [], []>} : vector<16x32xf32>, vector<32x32xf32>, vector<16x32xf32> -> vector<16x32xf32>
    %36 = vector.extract_strided_slice %1 {offsets = [5, 0], sizes = [1, 32], strides = [1, 1]} : vector<20x32xf32> to vector<1x32xf32>
    %37 = vector.broadcast %36 : vector<1x32xf32> to vector<16x32xf32>
    %38 = arith.addf %35, %37 : vector<16x32xf32>
    %cst_19 = arith.constant 0.000000e+00 : f32
    %39 = vector.broadcast %cst_19 : f32 to vector<16x32xf32>
    %40 = arith.maximumf %38, %39 : vector<16x32xf32>
    %41 = vector.extract_strided_slice %1 {offsets = [6, 0], sizes = [1, 32], strides = [1, 1]} : vector<20x32xf32> to vector<1x32xf32>
    %42 = vector.broadcast %41 : vector<1x32xf32> to vector<16x32xf32>
    %43 = arith.mulf %40, %42 : vector<16x32xf32>
    %44 = vector.extract_strided_slice %1 {offsets = [7, 0], sizes = [1, 32], strides = [1, 1]} : vector<20x32xf32> to vector<1x32xf32>
    %45 = vector.broadcast %44 : vector<1x32xf32> to vector<16x32xf32>
    %46 = arith.addf %43, %45 : vector<16x32xf32>
    %cst_20 = arith.constant dense<0.000000e+00> : vector<16x32xf32>
    %47 = tpu.matmul %0, %46, %cst_20 {dimension_numbers = #tpu.dot_dimension_numbers<[1], [0], [0], [1], [0, 0, 1, 1], [], []>} : vector<16x16xf32>, vector<16x32xf32>, vector<16x32xf32> -> vector<16x32xf32>
    %48 = vector.extract_strided_slice %2 {offsets = [32, 0], sizes = [32, 32], strides = [1, 1]} : vector<128x32xf32> to vector<32x32xf32>
    %cst_21 = arith.constant dense<0.000000e+00> : vector<16x32xf32>
    %49 = tpu.matmul %47, %48, %cst_21 {dimension_numbers = #tpu.dot_dimension_numbers<[1], [0], [0], [1], [0, 0, 1, 1], [], []>} : vector<16x32xf32>, vector<32x32xf32>, vector<16x32xf32> -> vector<16x32xf32>
    %50 = vector.extract_strided_slice %1 {offsets = [8, 0], sizes = [1, 32], strides = [1, 1]} : vector<20x32xf32> to vector<1x32xf32>
    %51 = vector.broadcast %50 : vector<1x32xf32> to vector<16x32xf32>
    %52 = arith.addf %49, %51 : vector<16x32xf32>
    %cst_22 = arith.constant 0.000000e+00 : f32
    %53 = vector.broadcast %cst_22 : f32 to vector<16x32xf32>
    %54 = arith.maximumf %52, %53 : vector<16x32xf32>
    %55 = vector.extract_strided_slice %3 {offsets = [64, 0], sizes = [32, 32], strides = [1, 1]} : vector<160x32xf32> to vector<32x32xf32>
    %cst_23 = arith.constant dense<0.000000e+00> : vector<16x32xf32>
    %56 = tpu.matmul %54, %55, %cst_23 {dimension_numbers = #tpu.dot_dimension_numbers<[1], [0], [0], [1], [0, 0, 1, 1], [], []>} : vector<16x32xf32>, vector<32x32xf32>, vector<16x32xf32> -> vector<16x32xf32>
    %57 = vector.extract_strided_slice %1 {offsets = [9, 0], sizes = [1, 32], strides = [1, 1]} : vector<20x32xf32> to vector<1x32xf32>
    %58 = vector.broadcast %57 : vector<1x32xf32> to vector<16x32xf32>
    %59 = arith.addf %56, %58 : vector<16x32xf32>
    %cst_24 = arith.constant 0.000000e+00 : f32
    %60 = vector.broadcast %cst_24 : f32 to vector<16x32xf32>
    %61 = arith.maximumf %59, %60 : vector<16x32xf32>
    %62 = vector.extract_strided_slice %1 {offsets = [10, 0], sizes = [1, 32], strides = [1, 1]} : vector<20x32xf32> to vector<1x32xf32>
    %63 = vector.broadcast %62 : vector<1x32xf32> to vector<16x32xf32>
    %64 = arith.mulf %61, %63 : vector<16x32xf32>
    %65 = vector.extract_strided_slice %1 {offsets = [11, 0], sizes = [1, 32], strides = [1, 1]} : vector<20x32xf32> to vector<1x32xf32>
    %66 = vector.broadcast %65 : vector<1x32xf32> to vector<16x32xf32>
    %67 = arith.addf %64, %66 : vector<16x32xf32>
    %cst_25 = arith.constant dense<0.000000e+00> : vector<16x32xf32>
    %68 = tpu.matmul %0, %67, %cst_25 {dimension_numbers = #tpu.dot_dimension_numbers<[1], [0], [0], [1], [0, 0, 1, 1], [], []>} : vector<16x16xf32>, vector<16x32xf32>, vector<16x32xf32> -> vector<16x32xf32>
    %69 = vector.extract_strided_slice %2 {offsets = [64, 0], sizes = [32, 32], strides = [1, 1]} : vector<128x32xf32> to vector<32x32xf32>
    %cst_26 = arith.constant dense<0.000000e+00> : vector<16x32xf32>
    %70 = tpu.matmul %68, %69, %cst_26 {dimension_numbers = #tpu.dot_dimension_numbers<[1], [0], [0], [1], [0, 0, 1, 1], [], []>} : vector<16x32xf32>, vector<32x32xf32>, vector<16x32xf32> -> vector<16x32xf32>
    %71 = vector.extract_strided_slice %1 {offsets = [12, 0], sizes = [1, 32], strides = [1, 1]} : vector<20x32xf32> to vector<1x32xf32>
    %72 = vector.broadcast %71 : vector<1x32xf32> to vector<16x32xf32>
    %73 = arith.addf %70, %72 : vector<16x32xf32>
    %cst_27 = arith.constant 0.000000e+00 : f32
    %74 = vector.broadcast %cst_27 : f32 to vector<16x32xf32>
    %75 = arith.maximumf %73, %74 : vector<16x32xf32>
    %76 = vector.extract_strided_slice %3 {offsets = [96, 0], sizes = [32, 32], strides = [1, 1]} : vector<160x32xf32> to vector<32x32xf32>
    %cst_28 = arith.constant dense<0.000000e+00> : vector<16x32xf32>
    %77 = tpu.matmul %75, %76, %cst_28 {dimension_numbers = #tpu.dot_dimension_numbers<[1], [0], [0], [1], [0, 0, 1, 1], [], []>} : vector<16x32xf32>, vector<32x32xf32>, vector<16x32xf32> -> vector<16x32xf32>
    %78 = vector.extract_strided_slice %1 {offsets = [13, 0], sizes = [1, 32], strides = [1, 1]} : vector<20x32xf32> to vector<1x32xf32>
    %79 = vector.broadcast %78 : vector<1x32xf32> to vector<16x32xf32>
    %80 = arith.addf %77, %79 : vector<16x32xf32>
    %cst_29 = arith.constant 0.000000e+00 : f32
    %81 = vector.broadcast %cst_29 : f32 to vector<16x32xf32>
    %82 = arith.maximumf %80, %81 : vector<16x32xf32>
    %83 = vector.extract_strided_slice %1 {offsets = [14, 0], sizes = [1, 32], strides = [1, 1]} : vector<20x32xf32> to vector<1x32xf32>
    %84 = vector.broadcast %83 : vector<1x32xf32> to vector<16x32xf32>
    %85 = arith.mulf %82, %84 : vector<16x32xf32>
    %86 = vector.extract_strided_slice %1 {offsets = [15, 0], sizes = [1, 32], strides = [1, 1]} : vector<20x32xf32> to vector<1x32xf32>
    %87 = vector.broadcast %86 : vector<1x32xf32> to vector<16x32xf32>
    %88 = arith.addf %85, %87 : vector<16x32xf32>
    %cst_30 = arith.constant dense<0.000000e+00> : vector<16x32xf32>
    %89 = tpu.matmul %0, %88, %cst_30 {dimension_numbers = #tpu.dot_dimension_numbers<[1], [0], [0], [1], [0, 0, 1, 1], [], []>} : vector<16x16xf32>, vector<16x32xf32>, vector<16x32xf32> -> vector<16x32xf32>
    %90 = vector.extract_strided_slice %2 {offsets = [96, 0], sizes = [32, 32], strides = [1, 1]} : vector<128x32xf32> to vector<32x32xf32>
    %cst_31 = arith.constant dense<0.000000e+00> : vector<16x32xf32>
    %91 = tpu.matmul %89, %90, %cst_31 {dimension_numbers = #tpu.dot_dimension_numbers<[1], [0], [0], [1], [0, 0, 1, 1], [], []>} : vector<16x32xf32>, vector<32x32xf32>, vector<16x32xf32> -> vector<16x32xf32>
    %92 = vector.extract_strided_slice %1 {offsets = [16, 0], sizes = [1, 32], strides = [1, 1]} : vector<20x32xf32> to vector<1x32xf32>
    %93 = vector.broadcast %92 : vector<1x32xf32> to vector<16x32xf32>
    %94 = arith.addf %91, %93 : vector<16x32xf32>
    %cst_32 = arith.constant 0.000000e+00 : f32
    %95 = vector.broadcast %cst_32 : f32 to vector<16x32xf32>
    %96 = arith.maximumf %94, %95 : vector<16x32xf32>
    %97 = vector.extract_strided_slice %3 {offsets = [128, 0], sizes = [32, 32], strides = [1, 1]} : vector<160x32xf32> to vector<32x32xf32>
    %cst_33 = arith.constant dense<0.000000e+00> : vector<16x32xf32>
    %98 = tpu.matmul %96, %97, %cst_33 {dimension_numbers = #tpu.dot_dimension_numbers<[1], [0], [0], [1], [0, 0, 1, 1], [], []>} : vector<16x32xf32>, vector<32x32xf32>, vector<16x32xf32> -> vector<16x32xf32>
    %99 = vector.extract_strided_slice %1 {offsets = [17, 0], sizes = [1, 32], strides = [1, 1]} : vector<20x32xf32> to vector<1x32xf32>
    %100 = vector.broadcast %99 : vector<1x32xf32> to vector<16x32xf32>
    %101 = arith.addf %98, %100 : vector<16x32xf32>
    %cst_34 = arith.constant 0.000000e+00 : f32
    %102 = vector.broadcast %cst_34 : f32 to vector<16x32xf32>
    %103 = arith.maximumf %101, %102 : vector<16x32xf32>
    %104 = vector.extract_strided_slice %1 {offsets = [18, 0], sizes = [1, 32], strides = [1, 1]} : vector<20x32xf32> to vector<1x32xf32>
    %105 = vector.broadcast %104 : vector<1x32xf32> to vector<16x32xf32>
    %106 = arith.mulf %103, %105 : vector<16x32xf32>
    %107 = vector.extract_strided_slice %1 {offsets = [19, 0], sizes = [1, 32], strides = [1, 1]} : vector<20x32xf32> to vector<1x32xf32>
    %108 = vector.broadcast %107 : vector<1x32xf32> to vector<16x32xf32>
    %109 = arith.addf %106, %108 : vector<16x32xf32>
    %c0_35 = arith.constant 0 : index
    %c0_36 = arith.constant 0 : index
    %110 = vector.load %arg7[%c0_35, %c0_36] : memref<2x16xf32, #tpu.memory_space<vmem>>, vector<2x16xf32>
    %cst_37 = arith.constant dense<0.000000e+00> : vector<2x32xf32>
    %111 = tpu.matmul %110, %109, %cst_37 {dimension_numbers = #tpu.dot_dimension_numbers<[1], [0], [0], [1], [0, 0, 1, 1], [], []>} : vector<2x16xf32>, vector<16x32xf32>, vector<2x32xf32> -> vector<2x32xf32>
    %c0_38 = arith.constant 0 : index
    %c0_39 = arith.constant 0 : index
    %112 = vector.load %arg8[%c0_38, %c0_39] : memref<32x128xf32, #tpu.memory_space<vmem>>, vector<32x128xf32>
    %cst_40 = arith.constant dense<0.000000e+00> : vector<2x128xf32>
    %113 = tpu.matmul %111, %112, %cst_40 {dimension_numbers = #tpu.dot_dimension_numbers<[1], [0], [0], [1], [0, 0, 1, 1], [], []>} : vector<2x32xf32>, vector<32x128xf32>, vector<2x128xf32> -> vector<2x128xf32>
    %c0_41 = arith.constant 0 : index
    %c0_42 = arith.constant 0 : index
    %114 = vector.load %arg9[%c0_41, %c0_42] : memref<1x128xf32, #tpu.memory_space<vmem>>, vector<1x128xf32>
    %115 = vector.broadcast %114 : vector<1x128xf32> to vector<2x128xf32>
    %116 = arith.addf %113, %115 : vector<2x128xf32>
    %cst_43 = arith.constant 0.000000e+00 : f32
    %117 = vector.broadcast %cst_43 : f32 to vector<2x128xf32>
    %118 = arith.maximumf %116, %117 : vector<2x128xf32>
    %c0_44 = arith.constant 0 : index
    %c0_45 = arith.constant 0 : index
    %119 = vector.load %arg10[%c0_44, %c0_45] : memref<2x128xf32, #tpu.memory_space<vmem>>, vector<2x128xf32>
    tpu.vector_store %arg10[%c0_44, %c0_45], %118 {strides = array<i32>} : memref<2x128xf32, #tpu.memory_space<vmem>>, vector<2x128xf32>,
    return
  }
  func.func @transform_0(%arg0: i32) -> (i32, i32) {
    %c0_i32 = arith.constant 0 : i32
    %c0_i32_0 = arith.constant 0 : i32
    %c0_i32_1 = arith.constant 0 : i32
    return %c0_i32, %c0_i32_0 : i32, i32
  }
  func.func @transform_1(%arg0: i32) -> (i32, i32) {
    %c0_i32 = arith.constant 0 : i32
    %c0_i32_0 = arith.constant 0 : i32
    %c0_i32_1 = arith.constant 0 : i32
    return %c0_i32, %c0_i32_0 : i32, i32
  }
  func.func @transform_2(%arg0: i32) -> (i32, i32) {
    %c0_i32 = arith.constant 0 : i32
    %c0_i32_0 = arith.constant 0 : i32
    %c0_i32_1 = arith.constant 0 : i32
    return %c0_i32, %c0_i32_0 : i32, i32
  }
  func.func @transform_3(%arg0: i32) -> (i32, i32) {
    %c0_i32 = arith.constant 0 : i32
    %c0_i32_0 = arith.constant 0 : i32
    %c0_i32_1 = arith.constant 0 : i32
    return %c0_i32, %c0_i32_0 : i32, i32
  }
  func.func @transform_4(%arg0: i32) -> (i32, i32) {
    %c0_i32 = arith.constant 0 : i32
    %c0_i32_0 = arith.constant 0 : i32
    %c0_i32_1 = arith.constant 0 : i32
    return %c0_i32, %c0_i32_0 : i32, i32
  }
  func.func @transform_5(%arg0: i32) -> (i32, i32) {
    %c0_i32 = arith.constant 0 : i32
    %c0_i32_0 = arith.constant 0 : i32
    %c0_i32_1 = arith.constant 0 : i32
    return %c0_i32, %c0_i32_0 : i32, i32
  }
  func.func @transform_6(%arg0: i32) -> (i32, i32) {
    %c0_i32 = arith.constant 0 : i32
    %c0_i32_0 = arith.constant 0 : i32
    %c0_i32_1 = arith.constant 0 : i32
    return %c0_i32, %c0_i32_0 : i32, i32
  }
  func.func @transform_7(%arg0: i32) -> (i32, i32) {
    %c0_i32 = arith.constant 0 : i32
    %c0_i32_0 = arith.constant 0 : i32
    %c0_i32_1 = arith.constant 0 : i32
    return %c0_i32, %c0_i32_0 : i32, i32
  }
  func.func @transform_8(%arg0: i32) -> (i32, i32) {
    %c0_i32 = arith.constant 0 : i32
    %c0_i32_0 = arith.constant 0 : i32
    %c0_i32_1 = arith.constant 0 : i32
    return %c0_i32, %c0_i32_0 : i32, i32
  }
  func.func @transform_9(%arg0: i32) -> (i32, i32) {
    %c0_i32 = arith.constant 0 : i32
    %c0_i32_0 = arith.constant 0 : i32
    %c0_i32_1 = arith.constant 0 : i32
    return %c0_i32, %c0_i32_0 : i32, i32
  }
}

</mosaic_0001>

<llo_original>
// kernel: tpu_custom_call.1
$region0: #{tpu_custom_call.1}
  #allocation0 [shape = 'u32[]', space=smem, size = 0x4, offset = 0x4, fixed_abs, tag = 'smem constant byte address 0x4 - core index']
  #allocation1 [shape = 'u32[144,128]{1,0:T(1,128)}', space=vmem, size = 0x12000, scoped, tag = 'internal scratch']
  %s0 = inlined_call_operand.vmem [shape: f32[16,16], index: 0, kind: input, shape index: {}]
  %s1 = inlined_call_operand.vmem [shape: f32[16,128], index: 1, kind: input, shape index: {}]
  %s2 = inlined_call_operand.vmem [shape: f32[128,32], index: 2, kind: input, shape index: {}]
  %s3 = inlined_call_operand.vmem [shape: f32[128,32], index: 3, kind: input, shape index: {}]
  %s4 = inlined_call_operand.vmem [shape: f32[160,32], index: 4, kind: input, shape index: {}]
  %s5 = inlined_call_operand.vmem [shape: f32[20,32], index: 5, kind: input, shape index: {}]
  %s6 = inlined_call_operand.vmem [shape: f32[2,16], index: 6, kind: input, shape index: {}]
  %s7 = inlined_call_operand.vmem [shape: f32[32,128], index: 7, kind: input, shape index: {}]
  %s8 = inlined_call_operand.vmem [shape: f32[1,128], index: 8, kind: input, shape index: {}]
  %s9 = inlined_call_operand.hbm [shape: f32[2,128], index: 9, kind: output, shape index: {}]
  %s10 = sld [smem:[#allocation0]]
  $region46: #{tpu_custom_call.1} parent=0
    _
  %s12 = ssub.s32 1, %s10
  %s13 = scalar_select 0, %s12, %s10
  $region1: #{tpu_custom_call.1} parent=0
    #allocation2 [shape = 'u8[1024]{0}', space=vmem, size = 0x400, scoped, tag = 'output window, operand 0, single buffered']
    #allocation3 [shape = 's32[1]{0}', space=sflag, size = 0x4, scoped, tag = 'scoped memory for tpu_custom_call.1']
    %14 = vsyncpa [#allocation3], 0
    // Predicated region
    $region2: #{tpu_custom_call.1} parent=1 // pred_check
      _
    $region3: #{tpu_custom_call.1} parent=1 // pred_check_branch
      %16 = sbr.rel (0) target = $region5
    $region4: #{tpu_custom_call.1} parent=1 // pred_region
      _
    $region5: #{tpu_custom_call.1} parent=1 // pred_fallthru
      _
    // Predicated region
    $region6: #{tpu_custom_call.1} parent=1 // pred_check
      _
    $region7: #{tpu_custom_call.1} parent=1 // pred_check_branch
      %18 = sbr.rel (0) target = $region9
    $region8: #{tpu_custom_call.1} parent=1 // pred_region
      _
    $region9: #{tpu_custom_call.1} parent=1 // pred_fallthru
      _
    // Predicated region
    $region10: #{tpu_custom_call.1} parent=1 // pred_check
      _
    $region11: #{tpu_custom_call.1} parent=1 // pred_check_branch
      %20 = sbr.rel (0) target = $region13
    $region12: #{tpu_custom_call.1} parent=1 // pred_region
      _
    $region13: #{tpu_custom_call.1} parent=1 // pred_fallthru
      _
    // Predicated region
    $region14: #{tpu_custom_call.1} parent=1 // pred_check
      _
    $region15: #{tpu_custom_call.1} parent=1 // pred_check_branch
      %22 = sbr.rel (0) target = $region17
    $region16: #{tpu_custom_call.1} parent=1 // pred_region
      _
    $region17: #{tpu_custom_call.1} parent=1 // pred_fallthru
      _
    // Predicated region
    $region18: #{tpu_custom_call.1} parent=1 // pred_check
      _
    $region19: #{tpu_custom_call.1} parent=1 // pred_check_branch
      %24 = sbr.rel (0) target = $region21
    $region20: #{tpu_custom_call.1} parent=1 // pred_region
      _
    $region21: #{tpu_custom_call.1} parent=1 // pred_fallthru
      _
    // Predicated region
    $region22: #{tpu_custom_call.1} parent=1 // pred_check
      _
    $region23: #{tpu_custom_call.1} parent=1 // pred_check_branch
      %26 = sbr.rel (0) target = $region25
    $region24: #{tpu_custom_call.1} parent=1 // pred_region
      _
    $region25: #{tpu_custom_call.1} parent=1 // pred_fallthru
      _
    // Predicated region
    $region26: #{tpu_custom_call.1} parent=1 // pred_check
      _
    $region27: #{tpu_custom_call.1} parent=1 // pred_check_branch
      %28 = sbr.rel (0) target = $region29
    $region28: #{tpu_custom_call.1} parent=1 // pred_region
      _
    $region29: #{tpu_custom_call.1} parent=1 // pred_fallthru
      _
    // Predicated region
    $region30: #{tpu_custom_call.1} parent=1 // pred_check
      _
    $region31: #{tpu_custom_call.1} parent=1 // pred_check_branch
      %30 = sbr.rel (0) target = $region33
    $region32: #{tpu_custom_call.1} parent=1 // pred_region
      _
    $region33: #{tpu_custom_call.1} parent=1 // pred_fallthru
      _
    // Predicated region
    $region34: #{tpu_custom_call.1} parent=1 // pred_check
      _
    $region35: #{tpu_custom_call.1} parent=1 // pred_check_branch
      %32 = sbr.rel (0) target = $region37
    $region36: #{tpu_custom_call.1} parent=1 // pred_region
      _
    $region37: #{tpu_custom_call.1} parent=1 // pred_fallthru
      _
    %v33 = vld [vmem:[%s0] sm:$0xff]
    %v34 = vld [vmem:[%s0 + $0x8] sm:$0xff]
    %v35 = vld [vmem:[%s5] sm:$0xff]
    %v36 = vld [vmem:[%s5 + $0x8] sm:$0xff]
    %v37 = vld [vmem:[%s5 + $0x10] sm:$0xf]
    %v38 = vld [vmem:[%s3] sm:$0xff]
    %v39 = vld [vmem:[%s3 + $0x8] sm:$0xff]
    %v40 = vld [vmem:[%s3 + $0x10] sm:$0xff]
    %v41 = vld [vmem:[%s3 + $0x18] sm:$0xff]
    %v42 = vld [vmem:[%s3 + $0x20] sm:$0xff]
    %v43 = vld [vmem:[%s3 + $0x28] sm:$0xff]
    %v44 = vld [vmem:[%s3 + $0x30] sm:$0xff]
    %v45 = vld [vmem:[%s3 + $0x38] sm:$0xff]
    %v46 = vld [vmem:[%s3 + $0x40] sm:$0xff]
    %v47 = vld [vmem:[%s3 + $0x48] sm:$0xff]
    %v48 = vld [vmem:[%s3 + $0x50] sm:$0xff]
    %v49 = vld [vmem:[%s3 + $0x58] sm:$0xff]
    %v50 = vld [vmem:[%s3 + $0x60] sm:$0xff]
    %v51 = vld [vmem:[%s3 + $0x68] sm:$0xff]
    %v52 = vld [vmem:[%s3 + $0x70] sm:$0xff]
    %v53 = vld [vmem:[%s3 + $0x78] sm:$0xff]
    %v54 = vld [vmem:[%s4] sm:$0xff]
    %v55 = vld [vmem:[%s4 + $0x8] sm:$0xff]
    %v56 = vld [vmem:[%s4 + $0x10] sm:$0xff]
    %v57 = vld [vmem:[%s4 + $0x18] sm:$0xff]
    %v58 = vld [vmem:[%s4 + $0x20] sm:$0xff]
    %v59 = vld [vmem:[%s4 + $0x28] sm:$0xff]
    %v60 = vld [vmem:[%s4 + $0x30] sm:$0xff]
    %v61 = vld [vmem:[%s4 + $0x38] sm:$0xff]
    %v62 = vld [vmem:[%s4 + $0x40] sm:$0xff]
    %v63 = vld [vmem:[%s4 + $0x48] sm:$0xff]
    %v64 = vld [vmem:[%s4 + $0x50] sm:$0xff]
    %v65 = vld [vmem:[%s4 + $0x58] sm:$0xff]
    %v66 = vld [vmem:[%s4 + $0x60] sm:$0xff]
    %v67 = vld [vmem:[%s4 + $0x68] sm:$0xff]
    %v68 = vld [vmem:[%s4 + $0x70] sm:$0xff]
    %v69 = vld [vmem:[%s4 + $0x78] sm:$0xff]
    %v70 = vld [vmem:[%s4 + $0x80] sm:$0xff]
    %v71 = vld [vmem:[%s4 + $0x88] sm:$0xff]
    %v72 = vld [vmem:[%s4 + $0x90] sm:$0xff]
    %v73 = vld [vmem:[%s4 + $0x98] sm:$0xff]
    %v74 = vld [vmem:[%s1] sm:$0xff]
    %v75 = vld [vmem:[%s1 + $0x8] sm:$0xff]
    %v76 = vld [vmem:[%s2] sm:$0xff]
    %v77 = vld [vmem:[%s2 + $0x8] sm:$0xff]
    %v78 = vld [vmem:[%s2 + $0x10] sm:$0xff]
    %v79 = vld [vmem:[%s2 + $0x18] sm:$0xff]
    %v80 = vld [vmem:[%s2 + $0x20] sm:$0xff]
    %v81 = vld [vmem:[%s2 + $0x28] sm:$0xff]
    %v82 = vld [vmem:[%s2 + $0x30] sm:$0xff]
    %v83 = vld [vmem:[%s2 + $0x38] sm:$0xff]
    %v84 = vld [vmem:[%s2 + $0x40] sm:$0xff]
    %v85 = vld [vmem:[%s2 + $0x48] sm:$0xff]
    %v86 = vld [vmem:[%s2 + $0x50] sm:$0xff]
    %v87 = vld [vmem:[%s2 + $0x58] sm:$0xff]
    %v88 = vld [vmem:[%s2 + $0x60] sm:$0xff]
    %v89 = vld [vmem:[%s2 + $0x68] sm:$0xff]
    %v90 = vld [vmem:[%s2 + $0x70] sm:$0xff]
    %v91 = vld [vmem:[%s2 + $0x78] sm:$0xff]
    %92 = vmatprep.subr.mxu0 0.0
    %93 = vmatpush1.msra.mxu0 %v91
    %94 = vmatprep.subr.mxu0 0.0
    %95 = vmatpush1.msra.mxu0 %v90
    %96 = vmatprep.subr.mxu0 0.0
    %97 = vmatpush1.msra.mxu0 %v89
    %98 = vmatprep.subr.mxu0 0.0
    %99 = vmatpush1.msra.mxu0 %v88
    %100 = vmatprep.subr.mxu0 0.0
    %101 = vmatpush1.msra.mxu0 %v87
    %102 = vmatprep.subr.mxu0 0.0
    %103 = vmatpush1.msra.mxu0 %v86
    %104 = vmatprep.subr.mxu0 0.0
    %105 = vmatpush1.msra.mxu0 %v85
    %106 = vmatprep.subr.mxu0 0.0
    %107 = vmatpush1.msra.mxu0 %v84
    %108 = vmatprep.subr.mxu0 0.0
    %109 = vmatpush1.msra.mxu0 %v83
    %110 = vmatprep.subr.mxu0 0.0
    %111 = vmatpush1.msra.mxu0 %v82
    %112 = vmatprep.subr.mxu0 0.0
    %113 = vmatpush1.msra.mxu0 %v81
    %114 = vmatprep.subr.mxu0 0.0
    %115 = vmatpush1.msra.mxu0 %v80
    %116 = vmatprep.subr.mxu0 0.0
    %117 = vmatpush1.msra.mxu0 %v79
    %118 = vmatprep.subr.mxu0 0.0
    %119 = vmatpush1.msra.mxu0 %v78
    %120 = vmatprep.subr.mxu0 0.0
    %121 = vmatpush1.msra.mxu0 %v77
    %122 = vmatprep.subr.mxu0 0.0
    %123 = vmatpush1.msra.mxu0 %v76
    %124 = vmatprep.subr.mxu0 0.0
    %125 = vmatpush2.msra.mxu0 0.0
    %126 = vmatprep.subr.mxu0 0.0
    %127 = vmatpush2.msra.mxu0 0.0
    %128 = vmatprep.subr.mxu0 0.0
    %129 = vmatpush2.msra.mxu0 0.0
    %130 = vmatprep.subr.mxu0 0.0
    %131 = vmatpush2.msra.mxu0 0.0
    %132 = vmatprep.subr.mxu0 0.0
    %133 = vmatpush2.msra.mxu0 0.0
    %134 = vmatprep.subr.mxu0 0.0
    %135 = vmatpush2.msra.mxu0 0.0
    %136 = vmatprep.subr.mxu0 0.0
    %137 = vmatpush2.msra.mxu0 0.0
    %138 = vmatprep.subr.mxu0 0.0
    %139 = vmatpush2.msra.mxu0 0.0
    %140 = vmatprep.subr.mxu0 0.0
    %141 = vmatpush2.msra.mxu0 0.0
    %142 = vmatprep.subr.mxu0 0.0
    %143 = vmatpush2.msra.mxu0 0.0
    %144 = vmatprep.subr.mxu0 0.0
    %145 = vmatpush2.msra.mxu0 0.0
    %146 = vmatprep.subr.mxu0 0.0
    %147 = vmatpush2.msra.mxu0 0.0
    %148 = vmatprep.subr.mxu0 0.0
    %149 = vmatpush2.msra.mxu0 0.0
    %150 = vmatprep.subr.mxu0 0.0
    %151 = vmatpush2.msra.mxu0 0.0
    %152 = vmatprep.subr.mxu0 0.0
    %153 = vmatpush2.msra.mxu0 0.0
    %154 = vmatprep.subr.mxu0 0.0
    %155 = vmatpush2.msra.mxu0 0.0
    %156 = vmatprep.mubr.f32.mxu0 0.0
    %157 = vmatmul.mubr.f32.gmra.mxu0 %v74
    %v158 = vpop.f32.mrf.mxu0
    %v159 = vadd.f32 0.0, %v158
    %v160 = vpop.f32.mrf.mxu0
    %161 = vmatprep.mubr.f32.mxu0 0.0
    %162 = vmatmul.mubr.f32.gmra.mxu0 %v75
    %v163 = vpop.f32.mrf.mxu0
    %v164 = vadd.f32 0.0, %v163
    %v165 = vpop.f32.mrf.mxu0
    %166 = vdwg.mxu0
    %v167 = vlaneseq
    %v168 = vshrl.u32 %v167, 7
    %v169 = vsub.s32 0, %v168
    %v170 = vrot.slane %v35, %v169
    %vm171 = vcmask 130048
    %v173 = vsel %vm171, %v33, 0
    %v176 = vsel %vm171, %v34, 0
    %178 = vmatprep.subr.mxu0 0.0
    %179 = vmatpush1.msra.mxu0 0.0
    %180 = vmatprep.subr.mxu0 0.0
    %181 = vmatpush1.msra.mxu0 0.0
    %182 = vmatprep.subr.mxu0 0.0
    %183 = vmatpush1.msra.mxu0 0.0
    %184 = vmatprep.subr.mxu0 0.0
    %185 = vmatpush1.msra.mxu0 0.0
    %186 = vmatprep.subr.mxu0 0.0
    %187 = vmatpush1.msra.mxu0 0.0
    %188 = vmatprep.subr.mxu0 0.0
    %189 = vmatpush1.msra.mxu0 0.0
    %190 = vmatprep.subr.mxu0 0.0
    %191 = vmatpush1.msra.mxu0 0.0
    %192 = vmatprep.subr.mxu0 0.0
    %193 = vmatpush1.msra.mxu0 0.0
    %194 = vmatprep.subr.mxu0 0.0
    %195 = vmatpush1.msra.mxu0 0.0
    %196 = vmatprep.subr.mxu0 0.0
    %197 = vmatpush1.msra.mxu0 0.0
    %198 = vmatprep.subr.mxu0 0.0
    %199 = vmatpush1.msra.mxu0 0.0
    %200 = vmatprep.subr.mxu0 0.0
    %201 = vmatpush1.msra.mxu0 0.0
    %202 = vmatprep.subr.mxu0 0.0
    %203 = vmatpush1.msra.mxu0 0.0
    %204 = vmatprep.subr.mxu0 0.0
    %205 = vmatpush1.msra.mxu0 0.0
    %206 = vmatprep.subr.mxu0 0.0
    %207 = vmatpush1.msra.mxu0 %v164
    %208 = vmatprep.subr.mxu0 0.0
    %209 = vmatpush1.msra.mxu0 %v159
    %210 = vmatprep.subr.mxu0 0.0
    %211 = vmatpush2.msra.mxu0 0.0
    %212 = vmatprep.subr.mxu0 0.0
    %213 = vmatpush2.msra.mxu0 0.0
    %214 = vmatprep.subr.mxu0 0.0
    %215 = vmatpush2.msra.mxu0 0.0
    %216 = vmatprep.subr.mxu0 0.0
    %217 = vmatpush2.msra.mxu0 0.0
    %218 = vmatprep.subr.mxu0 0.0
    %219 = vmatpush2.msra.mxu0 0.0
    %220 = vmatprep.subr.mxu0 0.0
    %221 = vmatpush2.msra.mxu0 0.0
    %222 = vmatprep.subr.mxu0 0.0
    %223 = vmatpush2.msra.mxu0 0.0
    %224 = vmatprep.subr.mxu0 0.0
    %225 = vmatpush2.msra.mxu0 0.0
    %226 = vmatprep.subr.mxu0 0.0
    %227 = vmatpush2.msra.mxu0 0.0
    %228 = vmatprep.subr.mxu0 0.0
    %229 = vmatpush2.msra.mxu0 0.0
    %230 = vmatprep.subr.mxu0 0.0
    %231 = vmatpush2.msra.mxu0 0.0
    %232 = vmatprep.subr.mxu0 0.0
    %233 = vmatpush2.msra.mxu0 0.0
    %234 = vmatprep.subr.mxu0 0.0
    %235 = vmatpush2.msra.mxu0 0.0
    %236 = vmatprep.subr.mxu0 0.0
    %237 = vmatpush2.msra.mxu0 0.0
    %238 = vmatprep.subr.mxu0 0.0
    %239 = vmatpush2.msra.mxu0 0.0
    %240 = vmatprep.subr.mxu0 0.0
    %241 = vmatpush2.msra.mxu0 0.0
    %242 = vmatprep.mubr.f32.mxu0 0.0
    %243 = vmatmul.mubr.f32.gmra.mxu0 %v173
    %v244 = vpop.f32.mrf.mxu0
    %v245 = vadd.f32 %v170, %v244
    %v246 = vpop.f32.mrf.mxu0
    %247 = vmatprep.mubr.f32.mxu0 0.0
    %248 = vmatmul.mubr.f32.gmra.mxu0 %v176
    %v249 = vpop.f32.mrf.mxu0
    %v250 = vadd.f32 %v170, %v249
    %v251 = vpop.f32.mrf.mxu0
    %252 = vdwg.mxu0
    %v253 = vmax.f32 %v245, 0.0
    %v254 = vmax.f32 %v250, 0.0
    %v255 = vlaneseq
    %v256 = vshrl.u32 %v255, 7
    %v257 = vsub.s32 1, %v256
    %v258 = vrot.slane %v35, %v257
    %vm259 = vcmask 261120
    %v261 = vsel %vm259, %v253, 0
    %v264 = vsel %vm259, %v254, 0
    %266 = vmatprep.subr.mxu0 0.0
    %267 = vmatpush1.msra.mxu0 0.0
    %268 = vmatprep.subr.mxu0 0.0
    %269 = vmatpush1.msra.mxu0 0.0
    %270 = vmatprep.subr.mxu0 0.0
    %271 = vmatpush1.msra.mxu0 0.0
    %272 = vmatprep.subr.mxu0 0.0
    %273 = vmatpush1.msra.mxu0 0.0
    %274 = vmatprep.subr.mxu0 0.0
    %275 = vmatpush1.msra.mxu0 0.0
    %276 = vmatprep.subr.mxu0 0.0
    %277 = vmatpush1.msra.mxu0 0.0
    %278 = vmatprep.subr.mxu0 0.0
    %279 = vmatpush1.msra.mxu0 0.0
    %280 = vmatprep.subr.mxu0 0.0
    %281 = vmatpush1.msra.mxu0 0.0
    %282 = vmatprep.subr.mxu0 0.0
    %283 = vmatpush1.msra.mxu0 0.0
    %284 = vmatprep.subr.mxu0 0.0
    %285 = vmatpush1.msra.mxu0 0.0
    %286 = vmatprep.subr.mxu0 0.0
    %287 = vmatpush1.msra.mxu0 0.0
    %288 = vmatprep.subr.mxu0 0.0
    %289 = vmatpush1.msra.mxu0 0.0
    %290 = vmatprep.subr.mxu0 0.0
    %291 = vmatpush1.msra.mxu0 %v57
    %292 = vmatprep.subr.mxu0 0.0
    %293 = vmatpush1.msra.mxu0 %v56
    %294 = vmatprep.subr.mxu0 0.0
    %295 = vmatpush1.msra.mxu0 %v55
    %296 = vmatprep.subr.mxu0 0.0
    %297 = vmatpush1.msra.mxu0 %v54
    %298 = vmatprep.subr.mxu0 0.0
    %299 = vmatpush2.msra.mxu0 0.0
    %300 = vmatprep.subr.mxu0 0.0
    %301 = vmatpush2.msra.mxu0 0.0
    %302 = vmatprep.subr.mxu0 0.0
    %303 = vmatpush2.msra.mxu0 0.0
    %304 = vmatprep.subr.mxu0 0.0
    %305 = vmatpush2.msra.mxu0 0.0
    %306 = vmatprep.subr.mxu0 0.0
    %307 = vmatpush2.msra.mxu0 0.0
    %308 = vmatprep.subr.mxu0 0.0
    %309 = vmatpush2.msra.mxu0 0.0
    %310 = vmatprep.subr.mxu0 0.0
    %311 = vmatpush2.msra.mxu0 0.0
    %312 = vmatprep.subr.mxu0 0.0
    %313 = vmatpush2.msra.mxu0 0.0
    %314 = vmatprep.subr.mxu0 0.0
    %315 = vmatpush2.msra.mxu0 0.0
    %316 = vmatprep.subr.mxu0 0.0
    %317 = vmatpush2.msra.mxu0 0.0
    %318 = vmatprep.subr.mxu0 0.0
    %319 = vmatpush2.msra.mxu0 0.0
    %320 = vmatprep.subr.mxu0 0.0
    %321 = vmatpush2.msra.mxu0 0.0
    %322 = vmatprep.subr.mxu0 0.0
    %323 = vmatpush2.msra.mxu0 0.0
    %324 = vmatprep.subr.mxu0 0.0
    %325 = vmatpush2.msra.mxu0 0.0
    %326 = vmatprep.subr.mxu0 0.0
    %327 = vmatpush2.msra.mxu0 0.0
    %328 = vmatprep.subr.mxu0 0.0
    %329 = vmatpush2.msra.mxu0 0.0
    %330 = vmatprep.mubr.f32.mxu0 0.0
    %331 = vmatmul.mubr.f32.gmra.mxu0 %v261
    %v332 = vpop.f32.mrf.mxu0
    %v333 = vadd.f32 %v258, %v332
    %v334 = vpop.f32.mrf.mxu0
    %335 = vmatprep.mubr.f32.mxu0 0.0
    %336 = vmatmul.mubr.f32.gmra.mxu0 %v264
    %v337 = vpop.f32.mrf.mxu0
    %v338 = vadd.f32 %v258, %v337
    %v339 = vpop.f32.mrf.mxu0
    %340 = vdwg.mxu0
    %v341 = vmax.f32 %v333, 0.0
    %v342 = vmax.f32 %v338, 0.0
    %v343 = vlaneseq
    %v344 = vshrl.u32 %v343, 7
    %v345 = vsub.s32 2, %v344
    %v346 = vrot.slane %v35, %v345
    %v347 = vmul.f32 %v341, %v346
    %v348 = vmul.f32 %v342, %v346
    %v349 = vlaneseq
    %v350 = vshrl.u32 %v349, 7
    %v351 = vsub.s32 3, %v350
    %v352 = vrot.slane %v35, %v351
    %v353 = vadd.f32 %v347, %v352
    %v354 = vadd.f32 %v348, %v352
    %355 = vmatprep.subr.mxu0 0.0
    %356 = vmatpush1.msra.mxu0 0.0
    %357 = vmatprep.subr.mxu0 0.0
    %358 = vmatpush1.msra.mxu0 0.0
    %359 = vmatprep.subr.mxu0 0.0
    %360 = vmatpush1.msra.mxu0 0.0
    %361 = vmatprep.subr.mxu0 0.0
    %362 = vmatpush1.msra.mxu0 0.0
    %363 = vmatprep.subr.mxu0 0.0
    %364 = vmatpush1.msra.mxu0 0.0
    %365 = vmatprep.subr.mxu0 0.0
    %366 = vmatpush1.msra.mxu0 0.0
    %367 = vmatprep.subr.mxu0 0.0
    %368 = vmatpush1.msra.mxu0 0.0
    %369 = vmatprep.subr.mxu0 0.0
    %370 = vmatpush1.msra.mxu0 0.0
    %371 = vmatprep.subr.mxu0 0.0
    %372 = vmatpush1.msra.mxu0 0.0
    %373 = vmatprep.subr.mxu0 0.0
    %374 = vmatpush1.msra.mxu0 0.0
    %375 = vmatprep.subr.mxu0 0.0
    %376 = vmatpush1.msra.mxu0 0.0
    %377 = vmatprep.subr.mxu0 0.0
    %378 = vmatpush1.msra.mxu0 0.0
    %379 = vmatprep.subr.mxu0 0.0
    %380 = vmatpush1.msra.mxu0 0.0
    %381 = vmatprep.subr.mxu0 0.0
    %382 = vmatpush1.msra.mxu0 0.0
    %383 = vmatprep.subr.mxu0 0.0
    %384 = vmatpush1.msra.mxu0 %v354
    %385 = vmatprep.subr.mxu0 0.0
    %386 = vmatpush1.msra.mxu0 %v353
    %387 = vmatprep.subr.mxu0 0.0
    %388 = vmatpush2.msra.mxu0 0.0
    %389 = vmatprep.subr.mxu0 0.0
    %390 = vmatpush2.msra.mxu0 0.0
    %391 = vmatprep.subr.mxu0 0.0
    %392 = vmatpush2.msra.mxu0 0.0
    %393 = vmatprep.subr.mxu0 0.0
    %394 = vmatpush2.msra.mxu0 0.0
    %395 = vmatprep.subr.mxu0 0.0
    %396 = vmatpush2.msra.mxu0 0.0
    %397 = vmatprep.subr.mxu0 0.0
    %398 = vmatpush2.msra.mxu0 0.0
    %399 = vmatprep.subr.mxu0 0.0
    %400 = vmatpush2.msra.mxu0 0.0
    %401 = vmatprep.subr.mxu0 0.0
    %402 = vmatpush2.msra.mxu0 0.0
    %403 = vmatprep.subr.mxu0 0.0
    %404 = vmatpush2.msra.mxu0 0.0
    %405 = vmatprep.subr.mxu0 0.0
    %406 = vmatpush2.msra.mxu0 0.0
    %407 = vmatprep.subr.mxu0 0.0
    %408 = vmatpush2.msra.mxu0 0.0
    %409 = vmatprep.subr.mxu0 0.0
    %410 = vmatpush2.msra.mxu0 0.0
    %411 = vmatprep.subr.mxu0 0.0
    %412 = vmatpush2.msra.mxu0 0.0
    %413 = vmatprep.subr.mxu0 0.0
    %414 = vmatpush2.msra.mxu0 0.0
    %415 = vmatprep.subr.mxu0 0.0
    %416 = vmatpush2.msra.mxu0 0.0
    %417 = vmatprep.subr.mxu0 0.0
    %418 = vmatpush2.msra.mxu0 0.0
    %419 = vmatprep.mubr.f32.mxu0 0.0
    %420 = vmatmul.mubr.f32.gmra.mxu0 %v173
    %v421 = vpop.f32.mrf.mxu0
    %v422 = vadd.f32 0.0, %v421
    %v423 = vpop.f32.mrf.mxu0
    %424 = vmatprep.mubr.f32.mxu0 0.0
    %425 = vmatmul.mubr.f32.gmra.mxu0 %v176
    %v426 = vpop.f32.mrf.mxu0
    %v427 = vadd.f32 0.0, %v426
    %v428 = vpop.f32.mrf.mxu0
    %429 = vdwg.mxu0
    %v430 = vlaneseq
    %v431 = vshrl.u32 %v430, 7
    %v432 = vsub.s32 4, %v431
    %v433 = vrot.slane %v35, %v432
    %v435 = vsel %vm259, %v422, 0
    %v438 = vsel %vm259, %v427, 0
    %440 = vmatprep.subr.mxu0 0.0
    %441 = vmatpush1.msra.mxu0 0.0
    %442 = vmatprep.subr.mxu0 0.0
    %443 = vmatpush1.msra.mxu0 0.0
    %444 = vmatprep.subr.mxu0 0.0
    %445 = vmatpush1.msra.mxu0 0.0
    %446 = vmatprep.subr.mxu0 0.0
    %447 = vmatpush1.msra.mxu0 0.0
    %448 = vmatprep.subr.mxu0 0.0
    %449 = vmatpush1.msra.mxu0 0.0
    %450 = vmatprep.subr.mxu0 0.0
    %451 = vmatpush1.msra.mxu0 0.0
    %452 = vmatprep.subr.mxu0 0.0
    %453 = vmatpush1.msra.mxu0 0.0
    %454 = vmatprep.subr.mxu0 0.0
    %455 = vmatpush1.msra.mxu0 0.0
    %456 = vmatprep.subr.mxu0 0.0
    %457 = vmatpush1.msra.mxu0 0.0
    %458 = vmatprep.subr.mxu0 0.0
    %459 = vmatpush1.msra.mxu0 0.0
    %460 = vmatprep.subr.mxu0 0.0
    %461 = vmatpush1.msra.mxu0 0.0
    %462 = vmatprep.subr.mxu0 0.0
    %463 = vmatpush1.msra.mxu0 0.0
    %464 = vmatprep.subr.mxu0 0.0
    %465 = vmatpush1.msra.mxu0 %v41
    %466 = vmatprep.subr.mxu0 0.0
    %467 = vmatpush1.msra.mxu0 %v40
    %468 = vmatprep.subr.mxu0 0.0
    %469 = vmatpush1.msra.mxu0 %v39
    %470 = vmatprep.subr.mxu0 0.0
    %471 = vmatpush1.msra.mxu0 %v38
    %472 = vmatprep.subr.mxu0 0.0
    %473 = vmatpush2.msra.mxu0 0.0
    %474 = vmatprep.subr.mxu0 0.0
    %475 = vmatpush2.msra.mxu0 0.0
    %476 = vmatprep.subr.mxu0 0.0
    %477 = vmatpush2.msra.mxu0 0.0
    %478 = vmatprep.subr.mxu0 0.0
    %479 = vmatpush2.msra.mxu0 0.0
    %480 = vmatprep.subr.mxu0 0.0
    %481 = vmatpush2.msra.mxu0 0.0
    %482 = vmatprep.subr.mxu0 0.0
    %483 = vmatpush2.msra.mxu0 0.0
    %484 = vmatprep.subr.mxu0 0.0
    %485 = vmatpush2.msra.mxu0 0.0
    %486 = vmatprep.subr.mxu0 0.0
    %487 = vmatpush2.msra.mxu0 0.0
    %488 = vmatprep.subr.mxu0 0.0
    %489 = vmatpush2.msra.mxu0 0.0
    %490 = vmatprep.subr.mxu0 0.0
    %491 = vmatpush2.msra.mxu0 0.0
    %492 = vmatprep.subr.mxu0 0.0
    %493 = vmatpush2.msra.mxu0 0.0
    %494 = vmatprep.subr.mxu0 0.0
    %495 = vmatpush2.msra.mxu0 0.0
    %496 = vmatprep.subr.mxu0 0.0
    %497 = vmatpush2.msra.mxu0 0.0
    %498 = vmatprep.subr.mxu0 0.0
    %499 = vmatpush2.msra.mxu0 0.0
    %500 = vmatprep.subr.mxu0 0.0
    %501 = vmatpush2.msra.mxu0 0.0
    %502 = vmatprep.subr.mxu0 0.0
    %503 = vmatpush2.msra.mxu0 0.0
    %504 = vmatprep.mubr.f32.mxu0 0.0
    %505 = vmatmul.mubr.f32.gmra.mxu0 %v435
    %v506 = vpop.f32.mrf.mxu0
    %v507 = vadd.f32 %v433, %v506
    %v508 = vpop.f32.mrf.mxu0
    %509 = vmatprep.mubr.f32.mxu0 0.0
    %510 = vmatmul.mubr.f32.gmra.mxu0 %v438
    %v511 = vpop.f32.mrf.mxu0
    %v512 = vadd.f32 %v433, %v511
    %v513 = vpop.f32.mrf.mxu0
    %514 = vdwg.mxu0
    %v515 = vmax.f32 %v507, 0.0
    %v516 = vmax.f32 %v512, 0.0
    %v517 = vlaneseq
    %v518 = vshrl.u32 %v517, 7
    %v519 = vsub.s32 5, %v518
    %v520 = vrot.slane %v35, %v519
    %v522 = vsel %vm259, %v515, 0
    %v525 = vsel %vm259, %v516, 0
    %527 = vmatprep.subr.mxu0 0.0
    %528 = vmatpush1.msra.mxu0 0.0
    %529 = vmatprep.subr.mxu0 0.0
    %530 = vmatpush1.msra.mxu0 0.0
    %531 = vmatprep.subr.mxu0 0.0
    %532 = vmatpush1.msra.mxu0 0.0
    %533 = vmatprep.subr.mxu0 0.0
    %534 = vmatpush1.msra.mxu0 0.0
    %535 = vmatprep.subr.mxu0 0.0
    %536 = vmatpush1.msra.mxu0 0.0
    %537 = vmatprep.subr.mxu0 0.0
    %538 = vmatpush1.msra.mxu0 0.0
    %539 = vmatprep.subr.mxu0 0.0
    %540 = vmatpush1.msra.mxu0 0.0
    %541 = vmatprep.subr.mxu0 0.0
    %542 = vmatpush1.msra.mxu0 0.0
    %543 = vmatprep.subr.mxu0 0.0
    %544 = vmatpush1.msra.mxu0 0.0
    %545 = vmatprep.subr.mxu0 0.0
    %546 = vmatpush1.msra.mxu0 0.0
    %547 = vmatprep.subr.mxu0 0.0
    %548 = vmatpush1.msra.mxu0 0.0
    %549 = vmatprep.subr.mxu0 0.0
    %550 = vmatpush1.msra.mxu0 0.0
    %551 = vmatprep.subr.mxu0 0.0
    %552 = vmatpush1.msra.mxu0 %v61
    %553 = vmatprep.subr.mxu0 0.0
    %554 = vmatpush1.msra.mxu0 %v60
    %555 = vmatprep.subr.mxu0 0.0
    %556 = vmatpush1.msra.mxu0 %v59
    %557 = vmatprep.subr.mxu0 0.0
    %558 = vmatpush1.msra.mxu0 %v58
    %559 = vmatprep.subr.mxu0 0.0
    %560 = vmatpush2.msra.mxu0 0.0
    %561 = vmatprep.subr.mxu0 0.0
    %562 = vmatpush2.msra.mxu0 0.0
    %563 = vmatprep.subr.mxu0 0.0
    %564 = vmatpush2.msra.mxu0 0.0
    %565 = vmatprep.subr.mxu0 0.0
    %566 = vmatpush2.msra.mxu0 0.0
    %567 = vmatprep.subr.mxu0 0.0
    %568 = vmatpush2.msra.mxu0 0.0
    %569 = vmatprep.subr.mxu0 0.0
    %570 = vmatpush2.msra.mxu0 0.0
    %571 = vmatprep.subr.mxu0 0.0
    %572 = vmatpush2.msra.mxu0 0.0
    %573 = vmatprep.subr.mxu0 0.0
    %574 = vmatpush2.msra.mxu0 0.0
    %575 = vmatprep.subr.mxu0 0.0
    %576 = vmatpush2.msra.mxu0 0.0
    %577 = vmatprep.subr.mxu0 0.0
    %578 = vmatpush2.msra.mxu0 0.0
    %579 = vmatprep.subr.mxu0 0.0
    %580 = vmatpush2.msra.mxu0 0.0
    %581 = vmatprep.subr.mxu0 0.0
    %582 = vmatpush2.msra.mxu0 0.0
    %583 = vmatprep.subr.mxu0 0.0
    %584 = vmatpush2.msra.mxu0 0.0
    %585 = vmatprep.subr.mxu0 0.0
    %586 = vmatpush2.msra.mxu0 0.0
    %587 = vmatprep.subr.mxu0 0.0
    %588 = vmatpush2.msra.mxu0 0.0
    %589 = vmatprep.subr.mxu0 0.0
    %590 = vmatpush2.msra.mxu0 0.0
    %591 = vmatprep.mubr.f32.mxu0 0.0
    %592 = vmatmul.mubr.f32.gmra.mxu0 %v522
    %v593 = vpop.f32.mrf.mxu0
    %v594 = vadd.f32 %v520, %v593
    %v595 = vpop.f32.mrf.mxu0
    %596 = vmatprep.mubr.f32.mxu0 0.0
    %597 = vmatmul.mubr.f32.gmra.mxu0 %v525
    %v598 = vpop.f32.mrf.mxu0
    %v599 = vadd.f32 %v520, %v598
    %v600 = vpop.f32.mrf.mxu0
    %601 = vdwg.mxu0
    %v602 = vmax.f32 %v594, 0.0
    %v603 = vmax.f32 %v599, 0.0
    %v604 = vlaneseq
    %v605 = vshrl.u32 %v604, 7
    %v606 = vsub.s32 6, %v605
    %v607 = vrot.slane %v35, %v606
    %v608 = vmul.f32 %v602, %v607
    %v609 = vmul.f32 %v603, %v607
    %v610 = vlaneseq
    %v611 = vshrl.u32 %v610, 7
    %v612 = vsub.s32 7, %v611
    %v613 = vrot.slane %v35, %v612
    %v614 = vadd.f32 %v608, %v613
    %v615 = vadd.f32 %v609, %v613
    %616 = vmatprep.subr.mxu0 0.0
    %617 = vmatpush1.msra.mxu0 0.0
    %618 = vmatprep.subr.mxu0 0.0
    %619 = vmatpush1.msra.mxu0 0.0
    %620 = vmatprep.subr.mxu0 0.0
    %621 = vmatpush1.msra.mxu0 0.0
    %622 = vmatprep.subr.mxu0 0.0
    %623 = vmatpush1.msra.mxu0 0.0
    %624 = vmatprep.subr.mxu0 0.0
    %625 = vmatpush1.msra.mxu0 0.0
    %626 = vmatprep.subr.mxu0 0.0
    %627 = vmatpush1.msra.mxu0 0.0
    %628 = vmatprep.subr.mxu0 0.0
    %629 = vmatpush1.msra.mxu0 0.0
    %630 = vmatprep.subr.mxu0 0.0
    %631 = vmatpush1.msra.mxu0 0.0
    %632 = vmatprep.subr.mxu0 0.0
    %633 = vmatpush1.msra.mxu0 0.0
    %634 = vmatprep.subr.mxu0 0.0
    %635 = vmatpush1.msra.mxu0 0.0
    %636 = vmatprep.subr.mxu0 0.0
    %637 = vmatpush1.msra.mxu0 0.0
    %638 = vmatprep.subr.mxu0 0.0
    %639 = vmatpush1.msra.mxu0 0.0
    %640 = vmatprep.subr.mxu0 0.0
    %641 = vmatpush1.msra.mxu0 0.0
    %642 = vmatprep.subr.mxu0 0.0
    %643 = vmatpush1.msra.mxu0 0.0
    %644 = vmatprep.subr.mxu0 0.0
    %645 = vmatpush1.msra.mxu0 %v615
    %646 = vmatprep.subr.mxu0 0.0
    %647 = vmatpush1.msra.mxu0 %v614
    %648 = vmatprep.subr.mxu0 0.0
    %649 = vmatpush2.msra.mxu0 0.0
    %650 = vmatprep.subr.mxu0 0.0
    %651 = vmatpush2.msra.mxu0 0.0
    %652 = vmatprep.subr.mxu0 0.0
    %653 = vmatpush2.msra.mxu0 0.0
    %654 = vmatprep.subr.mxu0 0.0
    %655 = vmatpush2.msra.mxu0 0.0
    %656 = vmatprep.subr.mxu0 0.0
    %657 = vmatpush2.msra.mxu0 0.0
    %658 = vmatprep.subr.mxu0 0.0
    %659 = vmatpush2.msra.mxu0 0.0
    %660 = vmatprep.subr.mxu0 0.0
    %661 = vmatpush2.msra.mxu0 0.0
    %662 = vmatprep.subr.mxu0 0.0
    %663 = vmatpush2.msra.mxu0 0.0
    %664 = vmatprep.subr.mxu0 0.0
    %665 = vmatpush2.msra.mxu0 0.0
    %666 = vmatprep.subr.mxu0 0.0
    %667 = vmatpush2.msra.mxu0 0.0
    %668 = vmatprep.subr.mxu0 0.0
    %669 = vmatpush2.msra.mxu0 0.0
    %670 = vmatprep.subr.mxu0 0.0
    %671 = vmatpush2.msra.mxu0 0.0
    %672 = vmatprep.subr.mxu0 0.0
    %673 = vmatpush2.msra.mxu0 0.0
    %674 = vmatprep.subr.mxu0 0.0
    %675 = vmatpush2.msra.mxu0 0.0
    %676 = vmatprep.subr.mxu0 0.0
    %677 = vmatpush2.msra.mxu0 0.0
    %678 = vmatprep.subr.mxu0 0.0
    %679 = vmatpush2.msra.mxu0 0.0
    %680 = vmatprep.mubr.f32.mxu0 0.0
    %681 = vmatmul.mubr.f32.gmra.mxu0 %v173
    %v682 = vpop.f32.mrf.mxu0
    %v683 = vadd.f32 0.0, %v682
    %v684 = vpop.f32.mrf.mxu0
    %685 = vmatprep.mubr.f32.mxu0 0.0
    %686 = vmatmul.mubr.f32.gmra.mxu0 %v176
    %v687 = vpop.f32.mrf.mxu0
    %v688 = vadd.f32 0.0, %v687
    %v689 = vpop.f32.mrf.mxu0
    %690 = vdwg.mxu0
    %v691 = vlaneseq
    %v692 = vshrl.u32 %v691, 7
    %v693 = vsub.s32 0, %v692
    %v694 = vrot.slane %v36, %v693
    %v696 = vsel %vm259, %v683, 0
    %v699 = vsel %vm259, %v688, 0
    %701 = vmatprep.subr.mxu0 0.0
    %702 = vmatpush1.msra.mxu0 0.0
    %703 = vmatprep.subr.mxu0 0.0
    %704 = vmatpush1.msra.mxu0 0.0
    %705 = vmatprep.subr.mxu0 0.0
    %706 = vmatpush1.msra.mxu0 0.0
    %707 = vmatprep.subr.mxu0 0.0
    %708 = vmatpush1.msra.mxu0 0.0
    %709 = vmatprep.subr.mxu0 0.0
    %710 = vmatpush1.msra.mxu0 0.0
    %711 = vmatprep.subr.mxu0 0.0
    %712 = vmatpush1.msra.mxu0 0.0
    %713 = vmatprep.subr.mxu0 0.0
    %714 = vmatpush1.msra.mxu0 0.0
    %715 = vmatprep.subr.mxu0 0.0
    %716 = vmatpush1.msra.mxu0 0.0
    %717 = vmatprep.subr.mxu0 0.0
    %718 = vmatpush1.msra.mxu0 0.0
    %719 = vmatprep.subr.mxu0 0.0
    %720 = vmatpush1.msra.mxu0 0.0
    %721 = vmatprep.subr.mxu0 0.0
    %722 = vmatpush1.msra.mxu0 0.0
    %723 = vmatprep.subr.mxu0 0.0
    %724 = vmatpush1.msra.mxu0 0.0
    %725 = vmatprep.subr.mxu0 0.0
    %726 = vmatpush1.msra.mxu0 %v45
    %727 = vmatprep.subr.mxu0 0.0
    %728 = vmatpush1.msra.mxu0 %v44
    %729 = vmatprep.subr.mxu0 0.0
    %730 = vmatpush1.msra.mxu0 %v43
    %731 = vmatprep.subr.mxu0 0.0
    %732 = vmatpush1.msra.mxu0 %v42
    %733 = vmatprep.subr.mxu0 0.0
    %734 = vmatpush2.msra.mxu0 0.0
    %735 = vmatprep.subr.mxu0 0.0
    %736 = vmatpush2.msra.mxu0 0.0
    %737 = vmatprep.subr.mxu0 0.0
    %738 = vmatpush2.msra.mxu0 0.0
    %739 = vmatprep.subr.mxu0 0.0
    %740 = vmatpush2.msra.mxu0 0.0
    %741 = vmatprep.subr.mxu0 0.0
    %742 = vmatpush2.msra.mxu0 0.0
    %743 = vmatprep.subr.mxu0 0.0
    %744 = vmatpush2.msra.mxu0 0.0
    %745 = vmatprep.subr.mxu0 0.0
    %746 = vmatpush2.msra.mxu0 0.0
    %747 = vmatprep.subr.mxu0 0.0
    %748 = vmatpush2.msra.mxu0 0.0
    %749 = vmatprep.subr.mxu0 0.0
    %750 = vmatpush2.msra.mxu0 0.0
    %751 = vmatprep.subr.mxu0 0.0
    %752 = vmatpush2.msra.mxu0 0.0
    %753 = vmatprep.subr.mxu0 0.0
    %754 = vmatpush2.msra.mxu0 0.0
    %755 = vmatprep.subr.mxu0 0.0
    %756 = vmatpush2.msra.mxu0 0.0
    %757 = vmatprep.subr.mxu0 0.0
    %758 = vmatpush2.msra.mxu0 0.0
    %759 = vmatprep.subr.mxu0 0.0
    %760 = vmatpush2.msra.mxu0 0.0
    %761 = vmatprep.subr.mxu0 0.0
    %762 = vmatpush2.msra.mxu0 0.0
    %763 = vmatprep.subr.mxu0 0.0
    %764 = vmatpush2.msra.mxu0 0.0
    %765 = vmatprep.mubr.f32.mxu0 0.0
    %766 = vmatmul.mubr.f32.gmra.mxu0 %v696
    %v767 = vpop.f32.mrf.mxu0
    %v768 = vadd.f32 %v694, %v767
    %v769 = vpop.f32.mrf.mxu0
    %770 = vmatprep.mubr.f32.mxu0 0.0
    %771 = vmatmul.mubr.f32.gmra.mxu0 %v699
    %v772 = vpop.f32.mrf.mxu0
    %v773 = vadd.f32 %v694, %v772
    %v774 = vpop.f32.mrf.mxu0
    %775 = vdwg.mxu0
    %v776 = vmax.f32 %v768, 0.0
    %v777 = vmax.f32 %v773, 0.0
    %v778 = vlaneseq
    %v779 = vshrl.u32 %v778, 7
    %v780 = vsub.s32 1, %v779
    %v781 = vrot.slane %v36, %v780
    %v783 = vsel %vm259, %v776, 0
    %v786 = vsel %vm259, %v777, 0
    %788 = vmatprep.subr.mxu0 0.0
    %789 = vmatpush1.msra.mxu0 0.0
    %790 = vmatprep.subr.mxu0 0.0
    %791 = vmatpush1.msra.mxu0 0.0
    %792 = vmatprep.subr.mxu0 0.0
    %793 = vmatpush1.msra.mxu0 0.0
    %794 = vmatprep.subr.mxu0 0.0
    %795 = vmatpush1.msra.mxu0 0.0
    %796 = vmatprep.subr.mxu0 0.0
    %797 = vmatpush1.msra.mxu0 0.0
    %798 = vmatprep.subr.mxu0 0.0
    %799 = vmatpush1.msra.mxu0 0.0
    %800 = vmatprep.subr.mxu0 0.0
    %801 = vmatpush1.msra.mxu0 0.0
    %802 = vmatprep.subr.mxu0 0.0
    %803 = vmatpush1.msra.mxu0 0.0
    %804 = vmatprep.subr.mxu0 0.0
    %805 = vmatpush1.msra.mxu0 0.0
    %806 = vmatprep.subr.mxu0 0.0
    %807 = vmatpush1.msra.mxu0 0.0
    %808 = vmatprep.subr.mxu0 0.0
    %809 = vmatpush1.msra.mxu0 0.0
    %810 = vmatprep.subr.mxu0 0.0
    %811 = vmatpush1.msra.mxu0 0.0
    %812 = vmatprep.subr.mxu0 0.0
    %813 = vmatpush1.msra.mxu0 %v65
    %814 = vmatprep.subr.mxu0 0.0
    %815 = vmatpush1.msra.mxu0 %v64
    %816 = vmatprep.subr.mxu0 0.0
    %817 = vmatpush1.msra.mxu0 %v63
    %818 = vmatprep.subr.mxu0 0.0
    %819 = vmatpush1.msra.mxu0 %v62
    %820 = vmatprep.subr.mxu0 0.0
    %821 = vmatpush2.msra.mxu0 0.0
    %822 = vmatprep.subr.mxu0 0.0
    %823 = vmatpush2.msra.mxu0 0.0
    %824 = vmatprep.subr.mxu0 0.0
    %825 = vmatpush2.msra.mxu0 0.0
    %826 = vmatprep.subr.mxu0 0.0
    %827 = vmatpush2.msra.mxu0 0.0
    %828 = vmatprep.subr.mxu0 0.0
    %829 = vmatpush2.msra.mxu0 0.0
    %830 = vmatprep.subr.mxu0 0.0
    %831 = vmatpush2.msra.mxu0 0.0
    %832 = vmatprep.subr.mxu0 0.0
    %833 = vmatpush2.msra.mxu0 0.0
    %834 = vmatprep.subr.mxu0 0.0
    %835 = vmatpush2.msra.mxu0 0.0
    %836 = vmatprep.subr.mxu0 0.0
    %837 = vmatpush2.msra.mxu0 0.0
    %838 = vmatprep.subr.mxu0 0.0
    %839 = vmatpush2.msra.mxu0 0.0
    %840 = vmatprep.subr.mxu0 0.0
    %841 = vmatpush2.msra.mxu0 0.0
    %842 = vmatprep.subr.mxu0 0.0
    %843 = vmatpush2.msra.mxu0 0.0
    %844 = vmatprep.subr.mxu0 0.0
    %845 = vmatpush2.msra.mxu0 0.0
    %846 = vmatprep.subr.mxu0 0.0
    %847 = vmatpush2.msra.mxu0 0.0
    %848 = vmatprep.subr.mxu0 0.0
    %849 = vmatpush2.msra.mxu0 0.0
    %850 = vmatprep.subr.mxu0 0.0
    %851 = vmatpush2.msra.mxu0 0.0
    %852 = vmatprep.mubr.f32.mxu0 0.0
    %853 = vmatmul.mubr.f32.gmra.mxu0 %v783
    %v854 = vpop.f32.mrf.mxu0
    %v855 = vadd.f32 %v781, %v854
    %v856 = vpop.f32.mrf.mxu0
    %857 = vmatprep.mubr.f32.mxu0 0.0
    %858 = vmatmul.mubr.f32.gmra.mxu0 %v786
    %v859 = vpop.f32.mrf.mxu0
    %v860 = vadd.f32 %v781, %v859
    %v861 = vpop.f32.mrf.mxu0
    %862 = vdwg.mxu0
    %v863 = vmax.f32 %v855, 0.0
    %v864 = vmax.f32 %v860, 0.0
    %v865 = vlaneseq
    %v866 = vshrl.u32 %v865, 7
    %v867 = vsub.s32 2, %v866
    %v868 = vrot.slane %v36, %v867
    %v869 = vmul.f32 %v863, %v868
    %v870 = vmul.f32 %v864, %v868
    %v871 = vlaneseq
    %v872 = vshrl.u32 %v871, 7
    %v873 = vsub.s32 3, %v872
    %v874 = vrot.slane %v36, %v873
    %v875 = vadd.f32 %v869, %v874
    %v876 = vadd.f32 %v870, %v874
    %877 = vmatprep.subr.mxu0 0.0
    %878 = vmatpush1.msra.mxu0 0.0
    %879 = vmatprep.subr.mxu0 0.0
    %880 = vmatpush1.msra.mxu0 0.0
    %881 = vmatprep.subr.mxu0 0.0
    %882 = vmatpush1.msra.mxu0 0.0
    %883 = vmatprep.subr.mxu0 0.0
    %884 = vmatpush1.msra.mxu0 0.0
    %885 = vmatprep.subr.mxu0 0.0
    %886 = vmatpush1.msra.mxu0 0.0
    %887 = vmatprep.subr.mxu0 0.0
    %888 = vmatpush1.msra.mxu0 0.0
    %889 = vmatprep.subr.mxu0 0.0
    %890 = vmatpush1.msra.mxu0 0.0
    %891 = vmatprep.subr.mxu0 0.0
    %892 = vmatpush1.msra.mxu0 0.0
    %893 = vmatprep.subr.mxu0 0.0
    %894 = vmatpush1.msra.mxu0 0.0
    %895 = vmatprep.subr.mxu0 0.0
    %896 = vmatpush1.msra.mxu0 0.0
    %897 = vmatprep.subr.mxu0 0.0
    %898 = vmatpush1.msra.mxu0 0.0
    %899 = vmatprep.subr.mxu0 0.0
    %900 = vmatpush1.msra.mxu0 0.0
    %901 = vmatprep.subr.mxu0 0.0
    %902 = vmatpush1.msra.mxu0 0.0
    %903 = vmatprep.subr.mxu0 0.0
    %904 = vmatpush1.msra.mxu0 0.0
    %905 = vmatprep.subr.mxu0 0.0
    %906 = vmatpush1.msra.mxu0 %v876
    %907 = vmatprep.subr.mxu0 0.0
    %908 = vmatpush1.msra.mxu0 %v875
    %909 = vmatprep.subr.mxu0 0.0
    %910 = vmatpush2.msra.mxu0 0.0
    %911 = vmatprep.subr.mxu0 0.0
    %912 = vmatpush2.msra.mxu0 0.0
    %913 = vmatprep.subr.mxu0 0.0
    %914 = vmatpush2.msra.mxu0 0.0
    %915 = vmatprep.subr.mxu0 0.0
    %916 = vmatpush2.msra.mxu0 0.0
    %917 = vmatprep.subr.mxu0 0.0
    %918 = vmatpush2.msra.mxu0 0.0
    %919 = vmatprep.subr.mxu0 0.0
    %920 = vmatpush2.msra.mxu0 0.0
    %921 = vmatprep.subr.mxu0 0.0
    %922 = vmatpush2.msra.mxu0 0.0
    %923 = vmatprep.subr.mxu0 0.0
    %924 = vmatpush2.msra.mxu0 0.0
    %925 = vmatprep.subr.mxu0 0.0
    %926 = vmatpush2.msra.mxu0 0.0
    %927 = vmatprep.subr.mxu0 0.0
    %928 = vmatpush2.msra.mxu0 0.0
    %929 = vmatprep.subr.mxu0 0.0
    %930 = vmatpush2.msra.mxu0 0.0
    %931 = vmatprep.subr.mxu0 0.0
    %932 = vmatpush2.msra.mxu0 0.0
    %933 = vmatprep.subr.mxu0 0.0
    %934 = vmatpush2.msra.mxu0 0.0
    %935 = vmatprep.subr.mxu0 0.0
    %936 = vmatpush2.msra.mxu0 0.0
    %937 = vmatprep.subr.mxu0 0.0
    %938 = vmatpush2.msra.mxu0 0.0
    %939 = vmatprep.subr.mxu0 0.0
    %940 = vmatpush2.msra.mxu0 0.0
    %941 = vmatprep.mubr.f32.mxu0 0.0
    %942 = vmatmul.mubr.f32.gmra.mxu0 %v173
    %v943 = vpop.f32.mrf.mxu0
    %v944 = vadd.f32 0.0, %v943
    %v945 = vpop.f32.mrf.mxu0
    %946 = vmatprep.mubr.f32.mxu0 0.0
    %947 = vmatmul.mubr.f32.gmra.mxu0 %v176
    %v948 = vpop.f32.mrf.mxu0
    %v949 = vadd.f32 0.0, %v948
    %v950 = vpop.f32.mrf.mxu0
    %951 = vdwg.mxu0
    %v952 = vlaneseq
    %v953 = vshrl.u32 %v952, 7
    %v954 = vsub.s32 4, %v953
    %v955 = vrot.slane %v36, %v954
    %v957 = vsel %vm259, %v944, 0
    %v960 = vsel %vm259, %v949, 0
    %962 = vmatprep.subr.mxu0 0.0
    %963 = vmatpush1.msra.mxu0 0.0
    %964 = vmatprep.subr.mxu0 0.0
    %965 = vmatpush1.msra.mxu0 0.0
    %966 = vmatprep.subr.mxu0 0.0
    %967 = vmatpush1.msra.mxu0 0.0
    %968 = vmatprep.subr.mxu0 0.0
    %969 = vmatpush1.msra.mxu0 0.0
    %970 = vmatprep.subr.mxu0 0.0
    %971 = vmatpush1.msra.mxu0 0.0
    %972 = vmatprep.subr.mxu0 0.0
    %973 = vmatpush1.msra.mxu0 0.0
    %974 = vmatprep.subr.mxu0 0.0
    %975 = vmatpush1.msra.mxu0 0.0
    %976 = vmatprep.subr.mxu0 0.0
    %977 = vmatpush1.msra.mxu0 0.0
    %978 = vmatprep.subr.mxu0 0.0
    %979 = vmatpush1.msra.mxu0 0.0
    %980 = vmatprep.subr.mxu0 0.0
    %981 = vmatpush1.msra.mxu0 0.0
    %982 = vmatprep.subr.mxu0 0.0
    %983 = vmatpush1.msra.mxu0 0.0
    %984 = vmatprep.subr.mxu0 0.0
    %985 = vmatpush1.msra.mxu0 0.0
    %986 = vmatprep.subr.mxu0 0.0
    %987 = vmatpush1.msra.mxu0 %v49
    %988 = vmatprep.subr.mxu0 0.0
    %989 = vmatpush1.msra.mxu0 %v48
    %990 = vmatprep.subr.mxu0 0.0
    %991 = vmatpush1.msra.mxu0 %v47
    %992 = vmatprep.subr.mxu0 0.0
    %993 = vmatpush1.msra.mxu0 %v46
    %994 = vmatprep.subr.mxu0 0.0
    %995 = vmatpush2.msra.mxu0 0.0
    %996 = vmatprep.subr.mxu0 0.0
    %997 = vmatpush2.msra.mxu0 0.0
    %998 = vmatprep.subr.mxu0 0.0
    %999 = vmatpush2.msra.mxu0 0.0
    %1000 = vmatprep.subr.mxu0 0.0
    %1001 = vmatpush2.msra.mxu0 0.0
    %1002 = vmatprep.subr.mxu0 0.0
    %1003 = vmatpush2.msra.mxu0 0.0
    %1004 = vmatprep.subr.mxu0 0.0
    %1005 = vmatpush2.msra.mxu0 0.0
    %1006 = vmatprep.subr.mxu0 0.0
    %1007 = vmatpush2.msra.mxu0 0.0
    %1008 = vmatprep.subr.mxu0 0.0
    %1009 = vmatpush2.msra.mxu0 0.0
    %1010 = vmatprep.subr.mxu0 0.0
    %1011 = vmatpush2.msra.mxu0 0.0
    %1012 = vmatprep.subr.mxu0 0.0
    %1013 = vmatpush2.msra.mxu0 0.0
    %1014 = vmatprep.subr.mxu0 0.0
    %1015 = vmatpush2.msra.mxu0 0.0
    %1016 = vmatprep.subr.mxu0 0.0
    %1017 = vmatpush2.msra.mxu0 0.0
    %1018 = vmatprep.subr.mxu0 0.0
    %1019 = vmatpush2.msra.mxu0 0.0
    %1020 = vmatprep.subr.mxu0 0.0
    %1021 = vmatpush2.msra.mxu0 0.0
    %1022 = vmatprep.subr.mxu0 0.0
    %1023 = vmatpush2.msra.mxu0 0.0
    %1024 = vmatprep.subr.mxu0 0.0
    %1025 = vmatpush2.msra.mxu0 0.0
    %1026 = vmatprep.mubr.f32.mxu0 0.0
    %1027 = vmatmul.mubr.f32.gmra.mxu0 %v957
    %v1028 = vpop.f32.mrf.mxu0
    %v1029 = vadd.f32 %v955, %v1028
    %v1030 = vpop.f32.mrf.mxu0
    %1031 = vmatprep.mubr.f32.mxu0 0.0
    %1032 = vmatmul.mubr.f32.gmra.mxu0 %v960
    %v1033 = vpop.f32.mrf.mxu0
    %v1034 = vadd.f32 %v955, %v1033
    %v1035 = vpop.f32.mrf.mxu0
    %1036 = vdwg.mxu0
    %v1037 = vmax.f32 %v1029, 0.0
    %v1038 = vmax.f32 %v1034, 0.0
    %v1039 = vlaneseq
    %v1040 = vshrl.u32 %v1039, 7
    %v1041 = vsub.s32 5, %v1040
    %v1042 = vrot.slane %v36, %v1041
    %v1044 = vsel %vm259, %v1037, 0
    %v1047 = vsel %vm259, %v1038, 0
    %1049 = vmatprep.subr.mxu0 0.0
    %1050 = vmatpush1.msra.mxu0 0.0
    %1051 = vmatprep.subr.mxu0 0.0
    %1052 = vmatpush1.msra.mxu0 0.0
    %1053 = vmatprep.subr.mxu0 0.0
    %1054 = vmatpush1.msra.mxu0 0.0
    %1055 = vmatprep.subr.mxu0 0.0
    %1056 = vmatpush1.msra.mxu0 0.0
    %1057 = vmatprep.subr.mxu0 0.0
    %1058 = vmatpush1.msra.mxu0 0.0
    %1059 = vmatprep.subr.mxu0 0.0
    %1060 = vmatpush1.msra.mxu0 0.0
    %1061 = vmatprep.subr.mxu0 0.0
    %1062 = vmatpush1.msra.mxu0 0.0
    %1063 = vmatprep.subr.mxu0 0.0
    %1064 = vmatpush1.msra.mxu0 0.0
    %1065 = vmatprep.subr.mxu0 0.0
    %1066 = vmatpush1.msra.mxu0 0.0
    %1067 = vmatprep.subr.mxu0 0.0
    %1068 = vmatpush1.msra.mxu0 0.0
    %1069 = vmatprep.subr.mxu0 0.0
    %1070 = vmatpush1.msra.mxu0 0.0
    %1071 = vmatprep.subr.mxu0 0.0
    %1072 = vmatpush1.msra.mxu0 0.0
    %1073 = vmatprep.subr.mxu0 0.0
    %1074 = vmatpush1.msra.mxu0 %v69
    %1075 = vmatprep.subr.mxu0 0.0
    %1076 = vmatpush1.msra.mxu0 %v68
    %1077 = vmatprep.subr.mxu0 0.0
    %1078 = vmatpush1.msra.mxu0 %v67
    %1079 = vmatprep.subr.mxu0 0.0
    %1080 = vmatpush1.msra.mxu0 %v66
    %1081 = vmatprep.subr.mxu0 0.0
    %1082 = vmatpush2.msra.mxu0 0.0
    %1083 = vmatprep.subr.mxu0 0.0
    %1084 = vmatpush2.msra.mxu0 0.0
    %1085 = vmatprep.subr.mxu0 0.0
    %1086 = vmatpush2.msra.mxu0 0.0
    %1087 = vmatprep.subr.mxu0 0.0
    %1088 = vmatpush2.msra.mxu0 0.0
    %1089 = vmatprep.subr.mxu0 0.0
    %1090 = vmatpush2.msra.mxu0 0.0
    %1091 = vmatprep.subr.mxu0 0.0
    %1092 = vmatpush2.msra.mxu0 0.0
    %1093 = vmatprep.subr.mxu0 0.0
    %1094 = vmatpush2.msra.mxu0 0.0
    %1095 = vmatprep.subr.mxu0 0.0
    %1096 = vmatpush2.msra.mxu0 0.0
    %1097 = vmatprep.subr.mxu0 0.0
    %1098 = vmatpush2.msra.mxu0 0.0
    %1099 = vmatprep.subr.mxu0 0.0
    %1100 = vmatpush2.msra.mxu0 0.0
    %1101 = vmatprep.subr.mxu0 0.0
    %1102 = vmatpush2.msra.mxu0 0.0
    %1103 = vmatprep.subr.mxu0 0.0
    %1104 = vmatpush2.msra.mxu0 0.0
    %1105 = vmatprep.subr.mxu0 0.0
    %1106 = vmatpush2.msra.mxu0 0.0
    %1107 = vmatprep.subr.mxu0 0.0
    %1108 = vmatpush2.msra.mxu0 0.0
    %1109 = vmatprep.subr.mxu0 0.0
    %1110 = vmatpush2.msra.mxu0 0.0
    %1111 = vmatprep.subr.mxu0 0.0
    %1112 = vmatpush2.msra.mxu0 0.0
    %1113 = vmatprep.mubr.f32.mxu0 0.0
    %1114 = vmatmul.mubr.f32.gmra.mxu0 %v1044
    %v1115 = vpop.f32.mrf.mxu0
    %v1116 = vadd.f32 %v1042, %v1115
    %v1117 = vpop.f32.mrf.mxu0
    %1118 = vmatprep.mubr.f32.mxu0 0.0
    %1119 = vmatmul.mubr.f32.gmra.mxu0 %v1047
    %v1120 = vpop.f32.mrf.mxu0
    %v1121 = vadd.f32 %v1042, %v1120
    %v1122 = vpop.f32.mrf.mxu0
    %1123 = vdwg.mxu0
    %v1124 = vmax.f32 %v1116, 0.0
    %v1125 = vmax.f32 %v1121, 0.0
    %v1126 = vlaneseq
    %v1127 = vshrl.u32 %v1126, 7
    %v1128 = vsub.s32 6, %v1127
    %v1129 = vrot.slane %v36, %v1128
    %v1130 = vmul.f32 %v1124, %v1129
    %v1131 = vmul.f32 %v1125, %v1129
    %v1132 = vlaneseq
    %v1133 = vshrl.u32 %v1132, 7
    %v1134 = vsub.s32 7, %v1133
    %v1135 = vrot.slane %v36, %v1134
    %v1136 = vadd.f32 %v1130, %v1135
    %v1137 = vadd.f32 %v1131, %v1135
    %1138 = vmatprep.subr.mxu0 0.0
    %1139 = vmatpush1.msra.mxu0 0.0
    %1140 = vmatprep.subr.mxu0 0.0
    %1141 = vmatpush1.msra.mxu0 0.0
    %1142 = vmatprep.subr.mxu0 0.0
    %1143 = vmatpush1.msra.mxu0 0.0
    %1144 = vmatprep.subr.mxu0 0.0
    %1145 = vmatpush1.msra.mxu0 0.0
    %1146 = vmatprep.subr.mxu0 0.0
    %1147 = vmatpush1.msra.mxu0 0.0
    %1148 = vmatprep.subr.mxu0 0.0
    %1149 = vmatpush1.msra.mxu0 0.0
    %1150 = vmatprep.subr.mxu0 0.0
    %1151 = vmatpush1.msra.mxu0 0.0
    %1152 = vmatprep.subr.mxu0 0.0
    %1153 = vmatpush1.msra.mxu0 0.0
    %1154 = vmatprep.subr.mxu0 0.0
    %1155 = vmatpush1.msra.mxu0 0.0
    %1156 = vmatprep.subr.mxu0 0.0
    %1157 = vmatpush1.msra.mxu0 0.0
    %1158 = vmatprep.subr.mxu0 0.0
    %1159 = vmatpush1.msra.mxu0 0.0
    %1160 = vmatprep.subr.mxu0 0.0
    %1161 = vmatpush1.msra.mxu0 0.0
    %1162 = vmatprep.subr.mxu0 0.0
    %1163 = vmatpush1.msra.mxu0 0.0
    %1164 = vmatprep.subr.mxu0 0.0
    %1165 = vmatpush1.msra.mxu0 0.0
    %1166 = vmatprep.subr.mxu0 0.0
    %1167 = vmatpush1.msra.mxu0 %v1137
    %1168 = vmatprep.subr.mxu0 0.0
    %1169 = vmatpush1.msra.mxu0 %v1136
    %1170 = vmatprep.subr.mxu0 0.0
    %1171 = vmatpush2.msra.mxu0 0.0
    %1172 = vmatprep.subr.mxu0 0.0
    %1173 = vmatpush2.msra.mxu0 0.0
    %1174 = vmatprep.subr.mxu0 0.0
    %1175 = vmatpush2.msra.mxu0 0.0
    %1176 = vmatprep.subr.mxu0 0.0
    %1177 = vmatpush2.msra.mxu0 0.0
    %1178 = vmatprep.subr.mxu0 0.0
    %1179 = vmatpush2.msra.mxu0 0.0
    %1180 = vmatprep.subr.mxu0 0.0
    %1181 = vmatpush2.msra.mxu0 0.0
    %1182 = vmatprep.subr.mxu0 0.0
    %1183 = vmatpush2.msra.mxu0 0.0
    %1184 = vmatprep.subr.mxu0 0.0
    %1185 = vmatpush2.msra.mxu0 0.0
    %1186 = vmatprep.subr.mxu0 0.0
    %1187 = vmatpush2.msra.mxu0 0.0
    %1188 = vmatprep.subr.mxu0 0.0
    %1189 = vmatpush2.msra.mxu0 0.0
    %1190 = vmatprep.subr.mxu0 0.0
    %1191 = vmatpush2.msra.mxu0 0.0
    %1192 = vmatprep.subr.mxu0 0.0
    %1193 = vmatpush2.msra.mxu0 0.0
    %1194 = vmatprep.subr.mxu0 0.0
    %1195 = vmatpush2.msra.mxu0 0.0
    %1196 = vmatprep.subr.mxu0 0.0
    %1197 = vmatpush2.msra.mxu0 0.0
    %1198 = vmatprep.subr.mxu0 0.0
    %1199 = vmatpush2.msra.mxu0 0.0
    %1200 = vmatprep.subr.mxu0 0.0
    %1201 = vmatpush2.msra.mxu0 0.0
    %1202 = vmatprep.mubr.f32.mxu0 0.0
    %1203 = vmatmul.mubr.f32.gmra.mxu0 %v173
    %v1204 = vpop.f32.mrf.mxu0
    %v1205 = vadd.f32 0.0, %v1204
    %v1206 = vpop.f32.mrf.mxu0
    %1207 = vmatprep.mubr.f32.mxu0 0.0
    %1208 = vmatmul.mubr.f32.gmra.mxu0 %v176
    %v1209 = vpop.f32.mrf.mxu0
    %v1210 = vadd.f32 0.0, %v1209
    %v1211 = vpop.f32.mrf.mxu0
    %1212 = vdwg.mxu0
    %v1213 = vlaneseq
    %v1214 = vshrl.u32 %v1213, 7
    %v1215 = vsub.s32 0, %v1214
    %v1216 = vrot.slane %v37, %v1215
    %v1218 = vsel %vm259, %v1205, 0
    %v1221 = vsel %vm259, %v1210, 0
    %1223 = vmatprep.subr.mxu0 0.0
    %1224 = vmatpush1.msra.mxu0 0.0
    %1225 = vmatprep.subr.mxu0 0.0
    %1226 = vmatpush1.msra.mxu0 0.0
    %1227 = vmatprep.subr.mxu0 0.0
    %1228 = vmatpush1.msra.mxu0 0.0
    %1229 = vmatprep.subr.mxu0 0.0
    %1230 = vmatpush1.msra.mxu0 0.0
    %1231 = vmatprep.subr.mxu0 0.0
    %1232 = vmatpush1.msra.mxu0 0.0
    %1233 = vmatprep.subr.mxu0 0.0
    %1234 = vmatpush1.msra.mxu0 0.0
    %1235 = vmatprep.subr.mxu0 0.0
    %1236 = vmatpush1.msra.mxu0 0.0
    %1237 = vmatprep.subr.mxu0 0.0
    %1238 = vmatpush1.msra.mxu0 0.0
    %1239 = vmatprep.subr.mxu0 0.0
    %1240 = vmatpush1.msra.mxu0 0.0
    %1241 = vmatprep.subr.mxu0 0.0
    %1242 = vmatpush1.msra.mxu0 0.0
    %1243 = vmatprep.subr.mxu0 0.0
    %1244 = vmatpush1.msra.mxu0 0.0
    %1245 = vmatprep.subr.mxu0 0.0
    %1246 = vmatpush1.msra.mxu0 0.0
    %1247 = vmatprep.subr.mxu0 0.0
    %1248 = vmatpush1.msra.mxu0 %v53
    %1249 = vmatprep.subr.mxu0 0.0
    %1250 = vmatpush1.msra.mxu0 %v52
    %1251 = vmatprep.subr.mxu0 0.0
    %1252 = vmatpush1.msra.mxu0 %v51
    %1253 = vmatprep.subr.mxu0 0.0
    %1254 = vmatpush1.msra.mxu0 %v50
    %1255 = vmatprep.subr.mxu0 0.0
    %1256 = vmatpush2.msra.mxu0 0.0
    %1257 = vmatprep.subr.mxu0 0.0
    %1258 = vmatpush2.msra.mxu0 0.0
    %1259 = vmatprep.subr.mxu0 0.0
    %1260 = vmatpush2.msra.mxu0 0.0
    %1261 = vmatprep.subr.mxu0 0.0
    %1262 = vmatpush2.msra.mxu0 0.0
    %1263 = vmatprep.subr.mxu0 0.0
    %1264 = vmatpush2.msra.mxu0 0.0
    %1265 = vmatprep.subr.mxu0 0.0
    %1266 = vmatpush2.msra.mxu0 0.0
    %1267 = vmatprep.subr.mxu0 0.0
    %1268 = vmatpush2.msra.mxu0 0.0
    %1269 = vmatprep.subr.mxu0 0.0
    %1270 = vmatpush2.msra.mxu0 0.0
    %1271 = vmatprep.subr.mxu0 0.0
    %1272 = vmatpush2.msra.mxu0 0.0
    %1273 = vmatprep.subr.mxu0 0.0
    %1274 = vmatpush2.msra.mxu0 0.0
    %1275 = vmatprep.subr.mxu0 0.0
    %1276 = vmatpush2.msra.mxu0 0.0
    %1277 = vmatprep.subr.mxu0 0.0
    %1278 = vmatpush2.msra.mxu0 0.0
    %1279 = vmatprep.subr.mxu0 0.0
    %1280 = vmatpush2.msra.mxu0 0.0
    %1281 = vmatprep.subr.mxu0 0.0
    %1282 = vmatpush2.msra.mxu0 0.0
    %1283 = vmatprep.subr.mxu0 0.0
    %1284 = vmatpush2.msra.mxu0 0.0
    %1285 = vmatprep.subr.mxu0 0.0
    %1286 = vmatpush2.msra.mxu0 0.0
    %1287 = vmatprep.mubr.f32.mxu0 0.0
    %1288 = vmatmul.mubr.f32.gmra.mxu0 %v1218
    %v1289 = vpop.f32.mrf.mxu0
    %v1290 = vadd.f32 %v1216, %v1289
    %v1291 = vpop.f32.mrf.mxu0
    %1292 = vmatprep.mubr.f32.mxu0 0.0
    %1293 = vmatmul.mubr.f32.gmra.mxu0 %v1221
    %v1294 = vpop.f32.mrf.mxu0
    %v1295 = vadd.f32 %v1216, %v1294
    %v1296 = vpop.f32.mrf.mxu0
    %1297 = vdwg.mxu0
    %v1298 = vmax.f32 %v1290, 0.0
    %v1299 = vmax.f32 %v1295, 0.0
    %v1300 = vlaneseq
    %v1301 = vshrl.u32 %v1300, 7
    %v1302 = vsub.s32 1, %v1301
    %v1303 = vrot.slane %v37, %v1302
    %v1305 = vsel %vm259, %v1298, 0
    %v1308 = vsel %vm259, %v1299, 0
    %1310 = vmatprep.subr.mxu0 0.0
    %1311 = vmatpush1.msra.mxu0 0.0
    %1312 = vmatprep.subr.mxu0 0.0
    %1313 = vmatpush1.msra.mxu0 0.0
    %1314 = vmatprep.subr.mxu0 0.0
    %1315 = vmatpush1.msra.mxu0 0.0
    %1316 = vmatprep.subr.mxu0 0.0
    %1317 = vmatpush1.msra.mxu0 0.0
    %1318 = vmatprep.subr.mxu0 0.0
    %1319 = vmatpush1.msra.mxu0 0.0
    %1320 = vmatprep.subr.mxu0 0.0
    %1321 = vmatpush1.msra.mxu0 0.0
    %1322 = vmatprep.subr.mxu0 0.0
    %1323 = vmatpush1.msra.mxu0 0.0
    %1324 = vmatprep.subr.mxu0 0.0
    %1325 = vmatpush1.msra.mxu0 0.0
    %1326 = vmatprep.subr.mxu0 0.0
    %1327 = vmatpush1.msra.mxu0 0.0
    %1328 = vmatprep.subr.mxu0 0.0
    %1329 = vmatpush1.msra.mxu0 0.0
    %1330 = vmatprep.subr.mxu0 0.0
    %1331 = vmatpush1.msra.mxu0 0.0
    %1332 = vmatprep.subr.mxu0 0.0
    %1333 = vmatpush1.msra.mxu0 0.0
    %1334 = vmatprep.subr.mxu0 0.0
    %1335 = vmatpush1.msra.mxu0 %v73
    %1336 = vmatprep.subr.mxu0 0.0
    %1337 = vmatpush1.msra.mxu0 %v72
    %1338 = vmatprep.subr.mxu0 0.0
    %1339 = vmatpush1.msra.mxu0 %v71
    %1340 = vmatprep.subr.mxu0 0.0
    %1341 = vmatpush1.msra.mxu0 %v70
    %1342 = vmatprep.subr.mxu0 0.0
    %1343 = vmatpush2.msra.mxu0 0.0
    %1344 = vmatprep.subr.mxu0 0.0
    %1345 = vmatpush2.msra.mxu0 0.0
    %1346 = vmatprep.subr.mxu0 0.0
    %1347 = vmatpush2.msra.mxu0 0.0
    %1348 = vmatprep.subr.mxu0 0.0
    %1349 = vmatpush2.msra.mxu0 0.0
    %1350 = vmatprep.subr.mxu0 0.0
    %1351 = vmatpush2.msra.mxu0 0.0
    %1352 = vmatprep.subr.mxu0 0.0
    %1353 = vmatpush2.msra.mxu0 0.0
    %1354 = vmatprep.subr.mxu0 0.0
    %1355 = vmatpush2.msra.mxu0 0.0
    %1356 = vmatprep.subr.mxu0 0.0
    %1357 = vmatpush2.msra.mxu0 0.0
    %1358 = vmatprep.subr.mxu0 0.0
    %1359 = vmatpush2.msra.mxu0 0.0
    %1360 = vmatprep.subr.mxu0 0.0
    %1361 = vmatpush2.msra.mxu0 0.0
    %1362 = vmatprep.subr.mxu0 0.0
    %1363 = vmatpush2.msra.mxu0 0.0
    %1364 = vmatprep.subr.mxu0 0.0
    %1365 = vmatpush2.msra.mxu0 0.0
    %1366 = vmatprep.subr.mxu0 0.0
    %1367 = vmatpush2.msra.mxu0 0.0
    %1368 = vmatprep.subr.mxu0 0.0
    %1369 = vmatpush2.msra.mxu0 0.0
    %1370 = vmatprep.subr.mxu0 0.0
    %1371 = vmatpush2.msra.mxu0 0.0
    %1372 = vmatprep.subr.mxu0 0.0
    %1373 = vmatpush2.msra.mxu0 0.0
    %1374 = vmatprep.mubr.f32.mxu0 0.0
    %1375 = vmatmul.mubr.f32.gmra.mxu0 %v1305
    %v1376 = vpop.f32.mrf.mxu0
    %v1377 = vadd.f32 %v1303, %v1376
    %v1378 = vpop.f32.mrf.mxu0
    %1379 = vmatprep.mubr.f32.mxu0 0.0
    %1380 = vmatmul.mubr.f32.gmra.mxu0 %v1308
    %v1381 = vpop.f32.mrf.mxu0
    %v1382 = vadd.f32 %v1303, %v1381
    %v1383 = vpop.f32.mrf.mxu0
    %1384 = vdwg.mxu0
    %v1385 = vmax.f32 %v1377, 0.0
    %v1386 = vmax.f32 %v1382, 0.0
    %v1387 = vlaneseq
    %v1388 = vshrl.u32 %v1387, 7
    %v1389 = vsub.s32 2, %v1388
    %v1390 = vrot.slane %v37, %v1389
    %v1391 = vmul.f32 %v1385, %v1390
    %v1392 = vmul.f32 %v1386, %v1390
    %v1393 = vlaneseq
    %v1394 = vshrl.u32 %v1393, 7
    %v1395 = vsub.s32 3, %v1394
    %v1396 = vrot.slane %v37, %v1395
    %v1397 = vadd.f32 %v1391, %v1396
    %v1398 = vadd.f32 %v1392, %v1396
    %v1399 = vld [vmem:[%s6] sm:$0x3]
    %v1401 = vsel %vm171, %v1399, 0
    %1403 = vmatprep.subr.mxu0 0.0
    %1404 = vmatpush1.msra.mxu0 0.0
    %1405 = vmatprep.subr.mxu0 0.0
    %1406 = vmatpush1.msra.mxu0 0.0
    %1407 = vmatprep.subr.mxu0 0.0
    %1408 = vmatpush1.msra.mxu0 0.0
    %1409 = vmatprep.subr.mxu0 0.0
    %1410 = vmatpush1.msra.mxu0 0.0
    %1411 = vmatprep.subr.mxu0 0.0
    %1412 = vmatpush1.msra.mxu0 0.0
    %1413 = vmatprep.subr.mxu0 0.0
    %1414 = vmatpush1.msra.mxu0 0.0
    %1415 = vmatprep.subr.mxu0 0.0
    %1416 = vmatpush1.msra.mxu0 0.0
    %1417 = vmatprep.subr.mxu0 0.0
    %1418 = vmatpush1.msra.mxu0 0.0
    %1419 = vmatprep.subr.mxu0 0.0
    %1420 = vmatpush1.msra.mxu0 0.0
    %1421 = vmatprep.subr.mxu0 0.0
    %1422 = vmatpush1.msra.mxu0 0.0
    %1423 = vmatprep.subr.mxu0 0.0
    %1424 = vmatpush1.msra.mxu0 0.0
    %1425 = vmatprep.subr.mxu0 0.0
    %1426 = vmatpush1.msra.mxu0 0.0
    %1427 = vmatprep.subr.mxu0 0.0
    %1428 = vmatpush1.msra.mxu0 0.0
    %1429 = vmatprep.subr.mxu0 0.0
    %1430 = vmatpush1.msra.mxu0 0.0
    %1431 = vmatprep.subr.mxu0 0.0
    %1432 = vmatpush1.msra.mxu0 %v1398
    %1433 = vmatprep.subr.mxu0 0.0
    %1434 = vmatpush1.msra.mxu0 %v1397
    %1435 = vmatprep.subr.mxu0 0.0
    %1436 = vmatpush2.msra.mxu0 0.0
    %1437 = vmatprep.subr.mxu0 0.0
    %1438 = vmatpush2.msra.mxu0 0.0
    %1439 = vmatprep.subr.mxu0 0.0
    %1440 = vmatpush2.msra.mxu0 0.0
    %1441 = vmatprep.subr.mxu0 0.0
    %1442 = vmatpush2.msra.mxu0 0.0
    %1443 = vmatprep.subr.mxu0 0.0
    %1444 = vmatpush2.msra.mxu0 0.0
    %1445 = vmatprep.subr.mxu0 0.0
    %1446 = vmatpush2.msra.mxu0 0.0
    %1447 = vmatprep.subr.mxu0 0.0
    %1448 = vmatpush2.msra.mxu0 0.0
    %1449 = vmatprep.subr.mxu0 0.0
    %1450 = vmatpush2.msra.mxu0 0.0
    %1451 = vmatprep.subr.mxu0 0.0
    %1452 = vmatpush2.msra.mxu0 0.0
    %1453 = vmatprep.subr.mxu0 0.0
    %1454 = vmatpush2.msra.mxu0 0.0
    %1455 = vmatprep.subr.mxu0 0.0
    %1456 = vmatpush2.msra.mxu0 0.0
    %1457 = vmatprep.subr.mxu0 0.0
    %1458 = vmatpush2.msra.mxu0 0.0
    %1459 = vmatprep.subr.mxu0 0.0
    %1460 = vmatpush2.msra.mxu0 0.0
    %1461 = vmatprep.subr.mxu0 0.0
    %1462 = vmatpush2.msra.mxu0 0.0
    %1463 = vmatprep.subr.mxu0 0.0
    %1464 = vmatpush2.msra.mxu0 0.0
    %1465 = vmatprep.subr.mxu0 0.0
    %1466 = vmatpush2.msra.mxu0 0.0
    %1467 = vmatprep.mubr.f32.mxu0 0.0
    %1468 = vmatmul.mubr.f32.gmra.mxu0 %v1401
    %v1469 = vpop.f32.mrf.mxu0
    %v1470 = vadd.f32 0.0, %v1469
    %v1471 = vpop.f32.mrf.mxu0
    %1472 = vdwg.mxu0
    %v1473 = vld [vmem:[%s7] sm:$0xff]
    %v1474 = vld [vmem:[%s7 + $0x8] sm:$0xff]
    %v1475 = vld [vmem:[%s7 + $0x10] sm:$0xff]
    %v1476 = vld [vmem:[%s7 + $0x18] sm:$0xff]
    %v1477 = vld [vmem:[%s8] sm:$0x1]
    %v1479 = vlaneseq
    %v1480 = vshrl.u32 %v1479, 7
    %v1481 = vsub.s32 0, %v1480
    %v1482 = vrot.slane %v1477, %v1481
    %v1485 = vsel %vm259, %v1470, 0
    %1487 = vmatprep.subr.mxu0 0.0
    %1488 = vmatpush1.msra.mxu0 0.0
    %1489 = vmatprep.subr.mxu0 0.0
    %1490 = vmatpush1.msra.mxu0 0.0
    %1491 = vmatprep.subr.mxu0 0.0
    %1492 = vmatpush1.msra.mxu0 0.0
    %1493 = vmatprep.subr.mxu0 0.0
    %1494 = vmatpush1.msra.mxu0 0.0
    %1495 = vmatprep.subr.mxu0 0.0
    %1496 = vmatpush1.msra.mxu0 0.0
    %1497 = vmatprep.subr.mxu0 0.0
    %1498 = vmatpush1.msra.mxu0 0.0
    %1499 = vmatprep.subr.mxu0 0.0
    %1500 = vmatpush1.msra.mxu0 0.0
    %1501 = vmatprep.subr.mxu0 0.0
    %1502 = vmatpush1.msra.mxu0 0.0
    %1503 = vmatprep.subr.mxu0 0.0
    %1504 = vmatpush1.msra.mxu0 0.0
    %1505 = vmatprep.subr.mxu0 0.0
    %1506 = vmatpush1.msra.mxu0 0.0
    %1507 = vmatprep.subr.mxu0 0.0
    %1508 = vmatpush1.msra.mxu0 0.0
    %1509 = vmatprep.subr.mxu0 0.0
    %1510 = vmatpush1.msra.mxu0 0.0
    %1511 = vmatprep.subr.mxu0 0.0
    %1512 = vmatpush1.msra.mxu0 %v1476
    %1513 = vmatprep.subr.mxu0 0.0
    %1514 = vmatpush1.msra.mxu0 %v1475
    %1515 = vmatprep.subr.mxu0 0.0
    %1516 = vmatpush1.msra.mxu0 %v1474
    %1517 = vmatprep.subr.mxu0 0.0
    %1518 = vmatpush1.msra.mxu0 %v1473
    %1519 = vmatprep.subr.mxu0 0.0
    %1520 = vmatpush2.msra.mxu0 0.0
    %1521 = vmatprep.subr.mxu0 0.0
    %1522 = vmatpush2.msra.mxu0 0.0
    %1523 = vmatprep.subr.mxu0 0.0
    %1524 = vmatpush2.msra.mxu0 0.0
    %1525 = vmatprep.subr.mxu0 0.0
    %1526 = vmatpush2.msra.mxu0 0.0
    %1527 = vmatprep.subr.mxu0 0.0
    %1528 = vmatpush2.msra.mxu0 0.0
    %1529 = vmatprep.subr.mxu0 0.0
    %1530 = vmatpush2.msra.mxu0 0.0
    %1531 = vmatprep.subr.mxu0 0.0
    %1532 = vmatpush2.msra.mxu0 0.0
    %1533 = vmatprep.subr.mxu0 0.0
    %1534 = vmatpush2.msra.mxu0 0.0
    %1535 = vmatprep.subr.mxu0 0.0
    %1536 = vmatpush2.msra.mxu0 0.0
    %1537 = vmatprep.subr.mxu0 0.0
    %1538 = vmatpush2.msra.mxu0 0.0
    %1539 = vmatprep.subr.mxu0 0.0
    %1540 = vmatpush2.msra.mxu0 0.0
    %1541 = vmatprep.subr.mxu0 0.0
    %1542 = vmatpush2.msra.mxu0 0.0
    %1543 = vmatprep.subr.mxu0 0.0
    %1544 = vmatpush2.msra.mxu0 0.0
    %1545 = vmatprep.subr.mxu0 0.0
    %1546 = vmatpush2.msra.mxu0 0.0
    %1547 = vmatprep.subr.mxu0 0.0
    %1548 = vmatpush2.msra.mxu0 0.0
    %1549 = vmatprep.subr.mxu0 0.0
    %1550 = vmatpush2.msra.mxu0 0.0
    %1551 = vmatprep.mubr.f32.mxu0 0.0
    %1552 = vmatmul.mubr.f32.gmra.mxu0 %v1485
    %v1553 = vpop.f32.mrf.mxu0
    %v1554 = vadd.f32 %v1482, %v1553
    %v1555 = vpop.f32.mrf.mxu0
    %1556 = vdwg.mxu0
    %v1557 = vmax.f32 %v1554, 0.0
    %1558 = vst [vmem:[#allocation2] sm:$0x3] %v1557
    // Predicated region
    $region38: #{tpu_custom_call.1} parent=1 // pred_check
      _
    $region39: #{tpu_custom_call.1} parent=1 // pred_check_branch
      %1560 = sbr.rel (0) target = $region41
    $region40: #{tpu_custom_call.1} parent=1 // pred_region
      %s1562 = ssub.s32 32, 32
      %1563 = vsyncadd [#allocation3], %s1562
      %s1565 = sshll.u32 [#allocation2], 4
      %s1566 = int_to_ptr.vmem [resolvable:$true] %s1565
      %1568 = dma.vmem_to_hbm [thread:$0]  %s1566, 32, %s9, [#allocation3]
    $region41: #{tpu_custom_call.1} parent=1 // pred_fallthru
      _
    // Predicated region
    $region42: #{tpu_custom_call.1} parent=1 // pred_check
      _
    $region43: #{tpu_custom_call.1} parent=1 // pred_check_branch
      %1570 = sbr.rel (0) target = $region45
    $region44: #{tpu_custom_call.1} parent=1 // pred_region
      %1571 = dma.done [#allocation3], 32
    $region45: #{tpu_custom_call.1} parent=1 // pred_fallthru
      _
    %1572 = vsyncpa [#allocation3], 1

</llo_original>
